<compile_context>
chip_gen: v7x
topology: tpu7x:2x2x1
jax: 0.10.0
libtpu: 0.0.40
codegen_flags: <defaults>
</compile_context>

<pallas_src>
import math
import numpy as np
import jax
import jax.numpy as jnp
from jax.experimental import pallas as pl
from jax.experimental.pallas import tpu as pltpu

FEATURE_SIZES = [6, 10, 2, 1, 1, 1, 1, 2, 1, 1, 2, 2]
FIELD_SIZE = 12
EMBEDDING_SIZE = 16
K = 5
DEEP_LAYERS = [32, 64, 32]

EMB_SIZES = [math.ceil(K * math.log(f)) if f != 1 else 1 for f in FEATURE_SIZES]
EMB_TOTAL = sum(EMB_SIZES)                         # 43
PROJ_DIM = FIELD_SIZE * EMBEDDING_SIZE             # 192
VOCAB_TOTAL = sum(FEATURE_SIZES)                   # 30
VOCAB_OFFSETS = [int(v) for v in np.cumsum([0] + FEATURE_SIZES[:-1])]

# Column layout of the merged (30 x 256) table produced by the single H-matmul.
S_OFF = PROJ_DIM                                   # 192 : s-term (16 cols)
D1_OFF = S_OFF + EMBEDDING_SIZE                    # 208 : folded MLP layer 1 (32 cols)
FM1_OFF = D1_OFF + DEEP_LAYERS[0]                  # 240 : first-order FM (1 col)
MERGED_N = 256                                     # padded to one 256-lane MXU tile


def _round_up(n, m):
    return ((n + m - 1) // m) * m


def deepcell_kernel(x_ref, wt_ref, wm_ref, bm_ref,
                    w2_ref, b2_ref, w3_ref, b3_ref,
                    w4_ref, b4_ref, bias_ref, out_ref):
    f32 = jnp.float32
    x = x_ref[...]                                   # (T, 12) int32 feature indices
    wt = wt_ref[...].astype(f32)                     # (T, 12) per-field weights (f32 math)
    T = x.shape[0]

    # Fused "gather": weighted multi-hot over the packed 30-slot vocabulary.
    # H[b, off_i + X[b, i]] = weight[b, i]  (exactly one nonzero per field block).
    # Pure VPU work -> overlaps with the MXU matmuls below in the VLIW schedule.
    col = jax.lax.broadcasted_iota(jnp.int32, (T, VOCAB_TOTAL), 1)
    h = jnp.zeros((T, VOCAB_TOTAL), f32)
    for i in range(FIELD_SIZE):                      # 12 small compare/select/add steps
        tgt_i = x[:, i:i + 1] + VOCAB_OFFSETS[i]     # (T, 1)
        h = h + jnp.where(col == tgt_i, wt[:, i:i + 1], 0.0)

    # ONE merged MXU pass over H produces: projected embeddings (proj), the folded
    # FM s-term (s), the folded first deep layer pre-activation (d1), and the
    # first-order FM term (fm1).
    big = jnp.dot(h, wm_ref[...], preferred_element_type=f32) + bm_ref[...]   # (T, 256)
    proj = big[:, 0:PROJ_DIM]                                                 # (T, 192)
    s = big[:, S_OFF:S_OFF + EMBEDDING_SIZE]                                  # (T, 16)
    d1 = big[:, D1_OFF:D1_OFF + DEEP_LAYERS[0]]                               # (T, 32)
    fm1 = big[:, FM1_OFF:FM1_OFF + 1]                                         # (T, 1)

    # FM second-order contribution to the output (only its lane-sum is ever used):
    # sum_k 0.5*(s_k^2 - sum_i l_ik^2) == 0.5*(sum_k s_k^2 - sum_all proj^2).
    fm2 = 0.5 * (jnp.sum(s * s, axis=1, keepdims=True)
                 - jnp.sum(proj * proj, axis=1, keepdims=True))               # (T, 1)

    # Deep MLP (dropout == identity, eval semantics).
    d = jnp.maximum(d1, 0.0)
    d = jnp.maximum(jnp.dot(d, w2_ref[...], preferred_element_type=f32) + b2_ref[...], 0.0)
    d = jnp.maximum(jnp.dot(d, w3_ref[...], preferred_element_type=f32) + b3_ref[...], 0.0)
    # Final Linear(32 -> 1): N=1 matmul replaced with VPU multiply + lane reduce.
    deep = jnp.maximum(jnp.sum(d * w4_ref[...], axis=1, keepdims=True) + b4_ref[...], 0.0)

    out_ref[...] = fm1 + fm2 + deep + bias_ref[...]


def init_params(key):
    """Raw per-field parameters mirroring the PyTorch module."""
    keys = jax.random.split(key, 64)
    ki = iter(keys)
    emb1 = [jax.random.normal(next(ki), (f, 1), jnp.float32) for f in FEATURE_SIZES]
    emb2 = [jax.random.normal(next(ki), (FEATURE_SIZES[i], EMB_SIZES[i]), jnp.float32)
            for i in range(FIELD_SIZE)]
    lin_w = [jax.random.normal(next(ki), (EMB_SIZES[i], EMBEDDING_SIZE), jnp.float32)
             / np.sqrt(EMB_SIZES[i]) for i in range(FIELD_SIZE)]
    lin_b = [0.01 * jax.random.normal(next(ki), (EMBEDDING_SIZE,), jnp.float32)
             for _ in range(FIELD_SIZE)]
    dims = [PROJ_DIM] + DEEP_LAYERS + [1]            # [192, 32, 64, 32, 1]
    mlp_w, mlp_b = [], []
    for i in range(4):
        mlp_w.append(jax.random.normal(next(ki), (dims[i], dims[i + 1]), jnp.float32)
                     / np.sqrt(dims[i]))
        mlp_b.append(0.01 * jax.random.normal(next(ki), (1, dims[i + 1]), jnp.float32))
    bias = jax.random.normal(next(ki), (1, 1), jnp.float32)
    return dict(emb1=emb1, emb2=emb2, lin_w=lin_w, lin_b=lin_b,
                w1=mlp_w[0], b1=mlp_b[0], w2=mlp_w[1], b2=mlp_b[1],
                w3=mlp_w[2], b3=mlp_b[2], w4=mlp_w[3], b4=mlp_b[3], bias=bias)


def pack_params(p):
    """Host-side packing + algebraic folds (done in float64, stored as float32)."""
    f64 = np.float64
    # Block-diagonal per-field projection (43, 192) and its bias (1, 192).
    w_proj = np.zeros((EMB_TOTAL, PROJ_DIM), f64)
    b_proj = np.zeros((1, PROJ_DIM), f64)
    off = 0
    for i in range(FIELD_SIZE):
        w_proj[off:off + EMB_SIZES[i],
               i * EMBEDDING_SIZE:(i + 1) * EMBEDDING_SIZE] = np.asarray(p["lin_w"][i], f64)
        b_proj[0, i * EMBEDDING_SIZE:(i + 1) * EMBEDDING_SIZE] = np.asarray(p["lin_b"][i], f64)
        off += EMB_SIZES[i]
    # Field-sum grouping matrix (192, 16): G[r, r % 16] = 1.
    g = np.zeros((PROJ_DIM, EMBEDDING_SIZE), f64)
    g[np.arange(PROJ_DIM), np.arange(PROJ_DIM) % EMBEDDING_SIZE] = 1.0
    # Packed vocab tables: first-order column (30, 1), block-diag second-order (30, 43).
    e1col = np.zeros((VOCAB_TOTAL, 1), f64)
    e2 = np.zeros((VOCAB_TOTAL, EMB_TOTAL), f64)
    voff, eoff = 0, 0
    for i in range(FIELD_SIZE):
        e1col[voff:voff + FEATURE_SIZES[i], 0] = np.asarray(p["emb1"][i], f64)[:, 0]
        e2[voff:voff + FEATURE_SIZES[i], eoff:eoff + EMB_SIZES[i]] = np.asarray(p["emb2"][i], f64)
        voff += FEATURE_SIZES[i]
        eoff += EMB_SIZES[i]

    w1 = np.asarray(p["w1"], f64)
    b1 = np.asarray(p["b1"], f64)
    wp = e2 @ w_proj                       # (30, 192) per-(field, vocab) projected embeddings
    ws = wp @ g                            # (30, 16)  folded s-term weights
    w1f = wp @ w1                          # (30, 32)  first MLP layer folded into vocab space
    bs = b_proj @ g                        # (1, 16)
    b1f = b_proj @ w1 + b1                 # (1, 32)

    # Merge everything that multiplies H into ONE (30, 256) table + bias row.
    wm = np.zeros((VOCAB_TOTAL, MERGED_N), f64)
    bm = np.zeros((1, MERGED_N), f64)
    wm[:, 0:PROJ_DIM] = wp
    wm[:, S_OFF:S_OFF + EMBEDDING_SIZE] = ws
    wm[:, D1_OFF:D1_OFF + DEEP_LAYERS[0]] = w1f
    wm[:, FM1_OFF] = e1col[:, 0]
    bm[0, 0:PROJ_DIM] = b_proj[0]
    bm[0, S_OFF:S_OFF + EMBEDDING_SIZE] = bs[0]
    bm[0, D1_OFF:D1_OFF + DEEP_LAYERS[0]] = b1f[0]

    packed = dict(
        wm=wm, bm=bm,
        w2=p["w2"], b2=p["b2"],
        w3=p["w3"], b3=p["b3"],
        w4=np.asarray(p["w4"], f64).reshape(1, -1),   # (1, 32) row for the VPU dot
        b4=p["b4"], bias=p["bias"])
    return {k: jnp.asarray(np.asarray(v, np.float32)) for k, v in packed.items()}


_PARAM_ORDER = ["wm", "bm", "w2", "b2", "w3", "b3", "w4", "b4", "bias"]


def deepcell_forward(packed, X, weight, *, tile_b=1024, weight_dtype=jnp.float32):
    """Fused DeepCell forward.  X: (B, 12) int, weight: (B, 12) float."""
    B = X.shape[0]
    tile = min(int(tile_b), _round_up(B, 16))
    tile = _round_up(tile, 16)
    B_pad = _round_up(B, tile)

    X = X.astype(jnp.int32)
    weight = weight.astype(weight_dtype)     # bf16 halves the weight HBM stream on v6e/v7x
    if B_pad != B:
        X = jnp.pad(X, ((0, B_pad - B), (0, 0)))
        weight = jnp.pad(weight, ((0, B_pad - B), (0, 0)))

    param_list = [packed[n] for n in _PARAM_ORDER]

    data_spec = pl.BlockSpec((tile, FIELD_SIZE), lambda i: (i, 0))
    # Small parameters stay resident in VMEM across the whole grid (constant block index).
    in_specs = [data_spec, data_spec] + [
        pl.BlockSpec(par.shape, lambda i: (0, 0)) for par in param_list
    ]

    out = pl.pallas_call(
        deepcell_kernel,
        grid=(B_pad // tile,),
        out_shape=jax.ShapeDtypeStruct((B_pad, 1), jnp.float32),
        in_specs=in_specs,
        out_specs=pl.BlockSpec((tile, 1), lambda i: (i, 0)),
        compiler_params=pltpu.CompilerParams(
            dimension_semantics=("parallel",)),     # megacore sharding on v7x
    )(X, weight, *param_list)
    return out[:B, 0]


def deepcell_reference(params, X, weight):
    """Pure-JAX reference mirroring the PyTorch forward (eval mode)."""
    first = [weight[:, i:i + 1] * params["emb1"][i][X[:, i]] for i in range(FIELD_SIZE)]
    fm1 = jnp.concatenate(first, axis=1)
    sec = [weight[:, i:i + 1] * params["emb2"][i][X[:, i]] for i in range(FIELD_SIZE)]
    lin = [sec[i] @ params["lin_w"][i] + params["lin_b"][i] for i in range(FIELD_SIZE)]
    s = sum(lin)
    sq = sum(l * l for l in lin)
    fm2 = 0.5 * (s * s - sq)
    h = jnp.concatenate(lin, axis=1)
    for w, b in [(params["w1"], params["b1"]), (params["w2"], params["b2"]),
                 (params["w3"], params["b3"]), (params["w4"], params["b4"])]:
        h = jnp.maximum(h @ w + b, 0.0)
    return jnp.sum(fm1, axis=1) + jnp.sum(fm2, axis=1) + h[:, 0] + params["bias"][0, 0]


if __name__ == "__main__":
    key = jax.random.PRNGKey(0)
    pkey, xkey, wkey = jax.random.split(key, 3)
    params = init_params(pkey)
    packed = pack_params(params)

    B = 37   # deliberately not a multiple of the tile: exercises padding + a 3-step grid
    xkeys = jax.random.split(xkey, FIELD_SIZE)
    X = jnp.stack([jax.random.randint(xkeys[i], (B,), 0, FEATURE_SIZES[i], dtype=jnp.int32)
                   for i in range(FIELD_SIZE)], axis=1)                      # (B, 12) indices
    weight = jax.random.normal(wkey, (B, FIELD_SIZE), jnp.float32)           # (B, 12) weights

    ref = deepcell_reference(params, X, weight)

    # f32 path, small tile -> exercises the multi-step batch grid with padding.
    out = jax.block_until_ready(deepcell_forward(packed, X, weight, tile_b=16))
    np.testing.assert_allclose(np.asarray(out), np.asarray(ref), rtol=2e-4, atol=2e-3)

    # f32 path, default (single-tile) grid.
    out_big = jax.block_until_ready(deepcell_forward(packed, X, weight))
    np.testing.assert_allclose(np.asarray(out_big), np.asarray(ref), rtol=2e-4, atol=2e-3)

    # bf16 weight-stream path (HBM saving on v6e/v7x); compute remains f32 inside the kernel.
    w_bf16_as_f32 = weight.astype(jnp.bfloat16).astype(jnp.float32)
    ref_bf = deepcell_reference(params, X, w_bf16_as_f32)
    out_bf = jax.block_until_ready(
        deepcell_forward(packed, X, weight, tile_b=16, weight_dtype=jnp.bfloat16))
    np.testing.assert_allclose(np.asarray(out_bf), np.asarray(ref_bf), rtol=2e-4, atol=2e-3)

    print("KERNEL_OK")
</pallas_src>

<mosaic_0001>
module attributes {stable_mosaic.version = 11 : i64} {
  func.func @deepcell_kernel(%arg0: i32, %arg1: memref<16x12xi32, #tpu.memory_space<vmem>>, %arg2: memref<16x12xf32, #tpu.memory_space<vmem>>, %arg3: memref<30x256xf32, #tpu.memory_space<vmem>>, %arg4: memref<1x256xf32, #tpu.memory_space<vmem>>, %arg5: memref<32x64xf32, #tpu.memory_space<vmem>>, %arg6: memref<1x64xf32, #tpu.memory_space<vmem>>, %arg7: memref<64x32xf32, #tpu.memory_space<vmem>>, %arg8: memref<1x32xf32, #tpu.memory_space<vmem>>, %arg9: memref<1x32xf32, #tpu.memory_space<vmem>>, %arg10: memref<1x1xf32, #tpu.memory_space<vmem>>, %arg11: memref<1x1xf32, #tpu.memory_space<vmem>>, %arg12: memref<16x1xf32, #tpu.memory_space<vmem>>) attributes {dimension_semantics = [#tpu.dimension_semantics<parallel>], iteration_bounds = array<i64: 3>, scalar_prefetch = 0 : i64, scratch_operands = 0 : i64, tpu.core_type = #tpu.core_type<tc>, window_params = [{transform_indices = @transform_0, window_bounds = array<i64: 16, 12>}, {transform_indices = @transform_1, window_bounds = array<i64: 16, 12>}, {pipeline_mode = #tpu.pipeline_mode<synchronous>, transform_indices = @transform_2, window_bounds = array<i64: 30, 256>}, {pipeline_mode = #tpu.pipeline_mode<synchronous>, transform_indices = @transform_3, window_bounds = array<i64: 1, 256>}, {pipeline_mode = #tpu.pipeline_mode<synchronous>, transform_indices = @transform_4, window_bounds = array<i64: 32, 64>}, {pipeline_mode = #tpu.pipeline_mode<synchronous>, transform_indices = @transform_5, window_bounds = array<i64: 1, 64>}, {pipeline_mode = #tpu.pipeline_mode<synchronous>, transform_indices = @transform_6, window_bounds = array<i64: 64, 32>}, {pipeline_mode = #tpu.pipeline_mode<synchronous>, transform_indices = @transform_7, window_bounds = array<i64: 1, 32>}, {pipeline_mode = #tpu.pipeline_mode<synchronous>, transform_indices = @transform_8, window_bounds = array<i64: 1, 32>}, {pipeline_mode = #tpu.pipeline_mode<synchronous>, transform_indices = @transform_9, window_bounds = array<i64: 1, 1>}, {pipeline_mode = #tpu.pipeline_mode<synchronous>, transform_indices = @transform_10, window_bounds = array<i64: 1, 1>}, {transform_indices = @transform_11, window_bounds = array<i64: 16, 1>}]} {
    %c0 = arith.constant 0 : index
    %c0_0 = arith.constant 0 : index
    %0 = vector.load %arg1[%c0, %c0_0] : memref<16x12xi32, #tpu.memory_space<vmem>>, vector<16x12xi32>
    %c0_1 = arith.constant 0 : index
    %c0_2 = arith.constant 0 : index
    %1 = vector.load %arg2[%c0_1, %c0_2] : memref<16x12xf32, #tpu.memory_space<vmem>>, vector<16x12xf32>
    %2 = tpu.iota {dimensions = array<i32: 1>} : vector<16x30xi32>
    %cst = arith.constant 0.000000e+00 : f32
    %3 = vector.broadcast %cst : f32 to vector<16x30xf32>
    %4 = vector.extract_strided_slice %0 {offsets = [0, 0], sizes = [16, 1], strides = [1, 1]} : vector<16x12xi32> to vector<16x1xi32>
    %c0_i32 = arith.constant 0 : i32
    %5 = vector.broadcast %c0_i32 : i32 to vector<16x1xi32>
    %6 = arith.addi %4, %5 : vector<16x1xi32>
    %7 = vector.broadcast %6 : vector<16x1xi32> to vector<16x30xi32>
    %8 = arith.cmpi eq, %2, %7 : vector<16x30xi32>
    %9 = vector.extract_strided_slice %1 {offsets = [0, 0], sizes = [16, 1], strides = [1, 1]} : vector<16x12xf32> to vector<16x1xf32>
    %cst_3 = arith.constant 0.000000e+00 : f32
    %10 = vector.shape_cast %9 : vector<16x1xf32> to vector<16x1xf32>
    %11 = vector.broadcast %10 : vector<16x1xf32> to vector<16x30xf32>
    %12 = vector.broadcast %cst_3 : f32 to vector<16x30xf32>
    %13 = arith.select %8, %11, %12 : vector<16x30xi1>, vector<16x30xf32>
    %14 = arith.addf %3, %13 : vector<16x30xf32>
    %15 = vector.extract_strided_slice %0 {offsets = [0, 1], sizes = [16, 1], strides = [1, 1]} : vector<16x12xi32> to vector<16x1xi32>
    %c6_i32 = arith.constant 6 : i32
    %16 = vector.broadcast %c6_i32 : i32 to vector<16x1xi32>
    %17 = arith.addi %15, %16 : vector<16x1xi32>
    %18 = vector.broadcast %17 : vector<16x1xi32> to vector<16x30xi32>
    %19 = arith.cmpi eq, %2, %18 : vector<16x30xi32>
    %20 = vector.extract_strided_slice %1 {offsets = [0, 1], sizes = [16, 1], strides = [1, 1]} : vector<16x12xf32> to vector<16x1xf32>
    %cst_4 = arith.constant 0.000000e+00 : f32
    %21 = vector.shape_cast %20 : vector<16x1xf32> to vector<16x1xf32>
    %22 = vector.broadcast %21 : vector<16x1xf32> to vector<16x30xf32>
    %23 = vector.broadcast %cst_4 : f32 to vector<16x30xf32>
    %24 = arith.select %19, %22, %23 : vector<16x30xi1>, vector<16x30xf32>
    %25 = arith.addf %14, %24 : vector<16x30xf32>
    %26 = vector.extract_strided_slice %0 {offsets = [0, 2], sizes = [16, 1], strides = [1, 1]} : vector<16x12xi32> to vector<16x1xi32>
    %c16_i32 = arith.constant 16 : i32
    %27 = vector.broadcast %c16_i32 : i32 to vector<16x1xi32>
    %28 = arith.addi %26, %27 : vector<16x1xi32>
    %29 = vector.broadcast %28 : vector<16x1xi32> to vector<16x30xi32>
    %30 = arith.cmpi eq, %2, %29 : vector<16x30xi32>
    %31 = vector.extract_strided_slice %1 {offsets = [0, 2], sizes = [16, 1], strides = [1, 1]} : vector<16x12xf32> to vector<16x1xf32>
    %cst_5 = arith.constant 0.000000e+00 : f32
    %32 = vector.shape_cast %31 : vector<16x1xf32> to vector<16x1xf32>
    %33 = vector.broadcast %32 : vector<16x1xf32> to vector<16x30xf32>
    %34 = vector.broadcast %cst_5 : f32 to vector<16x30xf32>
    %35 = arith.select %30, %33, %34 : vector<16x30xi1>, vector<16x30xf32>
    %36 = arith.addf %25, %35 : vector<16x30xf32>
    %37 = vector.extract_strided_slice %0 {offsets = [0, 3], sizes = [16, 1], strides = [1, 1]} : vector<16x12xi32> to vector<16x1xi32>
    %c18_i32 = arith.constant 18 : i32
    %38 = vector.broadcast %c18_i32 : i32 to vector<16x1xi32>
    %39 = arith.addi %37, %38 : vector<16x1xi32>
    %40 = vector.broadcast %39 : vector<16x1xi32> to vector<16x30xi32>
    %41 = arith.cmpi eq, %2, %40 : vector<16x30xi32>
    %42 = vector.extract_strided_slice %1 {offsets = [0, 3], sizes = [16, 1], strides = [1, 1]} : vector<16x12xf32> to vector<16x1xf32>
    %cst_6 = arith.constant 0.000000e+00 : f32
    %43 = vector.shape_cast %42 : vector<16x1xf32> to vector<16x1xf32>
    %44 = vector.broadcast %43 : vector<16x1xf32> to vector<16x30xf32>
    %45 = vector.broadcast %cst_6 : f32 to vector<16x30xf32>
    %46 = arith.select %41, %44, %45 : vector<16x30xi1>, vector<16x30xf32>
    %47 = arith.addf %36, %46 : vector<16x30xf32>
    %48 = vector.extract_strided_slice %0 {offsets = [0, 4], sizes = [16, 1], strides = [1, 1]} : vector<16x12xi32> to vector<16x1xi32>
    %c19_i32 = arith.constant 19 : i32
    %49 = vector.broadcast %c19_i32 : i32 to vector<16x1xi32>
    %50 = arith.addi %48, %49 : vector<16x1xi32>
    %51 = vector.broadcast %50 : vector<16x1xi32> to vector<16x30xi32>
    %52 = arith.cmpi eq, %2, %51 : vector<16x30xi32>
    %53 = vector.extract_strided_slice %1 {offsets = [0, 4], sizes = [16, 1], strides = [1, 1]} : vector<16x12xf32> to vector<16x1xf32>
    %cst_7 = arith.constant 0.000000e+00 : f32
    %54 = vector.shape_cast %53 : vector<16x1xf32> to vector<16x1xf32>
    %55 = vector.broadcast %54 : vector<16x1xf32> to vector<16x30xf32>
    %56 = vector.broadcast %cst_7 : f32 to vector<16x30xf32>
    %57 = arith.select %52, %55, %56 : vector<16x30xi1>, vector<16x30xf32>
    %58 = arith.addf %47, %57 : vector<16x30xf32>
    %59 = vector.extract_strided_slice %0 {offsets = [0, 5], sizes = [16, 1], strides = [1, 1]} : vector<16x12xi32> to vector<16x1xi32>
    %c20_i32 = arith.constant 20 : i32
    %60 = vector.broadcast %c20_i32 : i32 to vector<16x1xi32>
    %61 = arith.addi %59, %60 : vector<16x1xi32>
    %62 = vector.broadcast %61 : vector<16x1xi32> to vector<16x30xi32>
    %63 = arith.cmpi eq, %2, %62 : vector<16x30xi32>
    %64 = vector.extract_strided_slice %1 {offsets = [0, 5], sizes = [16, 1], strides = [1, 1]} : vector<16x12xf32> to vector<16x1xf32>
    %cst_8 = arith.constant 0.000000e+00 : f32
    %65 = vector.shape_cast %64 : vector<16x1xf32> to vector<16x1xf32>
    %66 = vector.broadcast %65 : vector<16x1xf32> to vector<16x30xf32>
    %67 = vector.broadcast %cst_8 : f32 to vector<16x30xf32>
    %68 = arith.select %63, %66, %67 : vector<16x30xi1>, vector<16x30xf32>
    %69 = arith.addf %58, %68 : vector<16x30xf32>
    %70 = vector.extract_strided_slice %0 {offsets = [0, 6], sizes = [16, 1], strides = [1, 1]} : vector<16x12xi32> to vector<16x1xi32>
    %c21_i32 = arith.constant 21 : i32
    %71 = vector.broadcast %c21_i32 : i32 to vector<16x1xi32>
    %72 = arith.addi %70, %71 : vector<16x1xi32>
    %73 = vector.broadcast %72 : vector<16x1xi32> to vector<16x30xi32>
    %74 = arith.cmpi eq, %2, %73 : vector<16x30xi32>
    %75 = vector.extract_strided_slice %1 {offsets = [0, 6], sizes = [16, 1], strides = [1, 1]} : vector<16x12xf32> to vector<16x1xf32>
    %cst_9 = arith.constant 0.000000e+00 : f32
    %76 = vector.shape_cast %75 : vector<16x1xf32> to vector<16x1xf32>
    %77 = vector.broadcast %76 : vector<16x1xf32> to vector<16x30xf32>
    %78 = vector.broadcast %cst_9 : f32 to vector<16x30xf32>
    %79 = arith.select %74, %77, %78 : vector<16x30xi1>, vector<16x30xf32>
    %80 = arith.addf %69, %79 : vector<16x30xf32>
    %81 = vector.extract_strided_slice %0 {offsets = [0, 7], sizes = [16, 1], strides = [1, 1]} : vector<16x12xi32> to vector<16x1xi32>
    %c22_i32 = arith.constant 22 : i32
    %82 = vector.broadcast %c22_i32 : i32 to vector<16x1xi32>
    %83 = arith.addi %81, %82 : vector<16x1xi32>
    %84 = vector.broadcast %83 : vector<16x1xi32> to vector<16x30xi32>
    %85 = arith.cmpi eq, %2, %84 : vector<16x30xi32>
    %86 = vector.extract_strided_slice %1 {offsets = [0, 7], sizes = [16, 1], strides = [1, 1]} : vector<16x12xf32> to vector<16x1xf32>
    %cst_10 = arith.constant 0.000000e+00 : f32
    %87 = vector.shape_cast %86 : vector<16x1xf32> to vector<16x1xf32>
    %88 = vector.broadcast %87 : vector<16x1xf32> to vector<16x30xf32>
    %89 = vector.broadcast %cst_10 : f32 to vector<16x30xf32>
    %90 = arith.select %85, %88, %89 : vector<16x30xi1>, vector<16x30xf32>
    %91 = arith.addf %80, %90 : vector<16x30xf32>
    %92 = vector.extract_strided_slice %0 {offsets = [0, 8], sizes = [16, 1], strides = [1, 1]} : vector<16x12xi32> to vector<16x1xi32>
    %c24_i32 = arith.constant 24 : i32
    %93 = vector.broadcast %c24_i32 : i32 to vector<16x1xi32>
    %94 = arith.addi %92, %93 : vector<16x1xi32>
    %95 = vector.broadcast %94 : vector<16x1xi32> to vector<16x30xi32>
    %96 = arith.cmpi eq, %2, %95 : vector<16x30xi32>
    %97 = vector.extract_strided_slice %1 {offsets = [0, 8], sizes = [16, 1], strides = [1, 1]} : vector<16x12xf32> to vector<16x1xf32>
    %cst_11 = arith.constant 0.000000e+00 : f32
    %98 = vector.shape_cast %97 : vector<16x1xf32> to vector<16x1xf32>
    %99 = vector.broadcast %98 : vector<16x1xf32> to vector<16x30xf32>
    %100 = vector.broadcast %cst_11 : f32 to vector<16x30xf32>
    %101 = arith.select %96, %99, %100 : vector<16x30xi1>, vector<16x30xf32>
    %102 = arith.addf %91, %101 : vector<16x30xf32>
    %103 = vector.extract_strided_slice %0 {offsets = [0, 9], sizes = [16, 1], strides = [1, 1]} : vector<16x12xi32> to vector<16x1xi32>
    %c25_i32 = arith.constant 25 : i32
    %104 = vector.broadcast %c25_i32 : i32 to vector<16x1xi32>
    %105 = arith.addi %103, %104 : vector<16x1xi32>
    %106 = vector.broadcast %105 : vector<16x1xi32> to vector<16x30xi32>
    %107 = arith.cmpi eq, %2, %106 : vector<16x30xi32>
    %108 = vector.extract_strided_slice %1 {offsets = [0, 9], sizes = [16, 1], strides = [1, 1]} : vector<16x12xf32> to vector<16x1xf32>
    %cst_12 = arith.constant 0.000000e+00 : f32
    %109 = vector.shape_cast %108 : vector<16x1xf32> to vector<16x1xf32>
    %110 = vector.broadcast %109 : vector<16x1xf32> to vector<16x30xf32>
    %111 = vector.broadcast %cst_12 : f32 to vector<16x30xf32>
    %112 = arith.select %107, %110, %111 : vector<16x30xi1>, vector<16x30xf32>
    %113 = arith.addf %102, %112 : vector<16x30xf32>
    %114 = vector.extract_strided_slice %0 {offsets = [0, 10], sizes = [16, 1], strides = [1, 1]} : vector<16x12xi32> to vector<16x1xi32>
    %c26_i32 = arith.constant 26 : i32
    %115 = vector.broadcast %c26_i32 : i32 to vector<16x1xi32>
    %116 = arith.addi %114, %115 : vector<16x1xi32>
    %117 = vector.broadcast %116 : vector<16x1xi32> to vector<16x30xi32>
    %118 = arith.cmpi eq, %2, %117 : vector<16x30xi32>
    %119 = vector.extract_strided_slice %1 {offsets = [0, 10], sizes = [16, 1], strides = [1, 1]} : vector<16x12xf32> to vector<16x1xf32>
    %cst_13 = arith.constant 0.000000e+00 : f32
    %120 = vector.shape_cast %119 : vector<16x1xf32> to vector<16x1xf32>
    %121 = vector.broadcast %120 : vector<16x1xf32> to vector<16x30xf32>
    %122 = vector.broadcast %cst_13 : f32 to vector<16x30xf32>
    %123 = arith.select %118, %121, %122 : vector<16x30xi1>, vector<16x30xf32>
    %124 = arith.addf %113, %123 : vector<16x30xf32>
    %125 = vector.extract_strided_slice %0 {offsets = [0, 11], sizes = [16, 1], strides = [1, 1]} : vector<16x12xi32> to vector<16x1xi32>
    %c28_i32 = arith.constant 28 : i32
    %126 = vector.broadcast %c28_i32 : i32 to vector<16x1xi32>
    %127 = arith.addi %125, %126 : vector<16x1xi32>
    %128 = vector.broadcast %127 : vector<16x1xi32> to vector<16x30xi32>
    %129 = arith.cmpi eq, %2, %128 : vector<16x30xi32>
    %130 = vector.extract_strided_slice %1 {offsets = [0, 11], sizes = [16, 1], strides = [1, 1]} : vector<16x12xf32> to vector<16x1xf32>
    %cst_14 = arith.constant 0.000000e+00 : f32
    %131 = vector.shape_cast %130 : vector<16x1xf32> to vector<16x1xf32>
    %132 = vector.broadcast %131 : vector<16x1xf32> to vector<16x30xf32>
    %133 = vector.broadcast %cst_14 : f32 to vector<16x30xf32>
    %134 = arith.select %129, %132, %133 : vector<16x30xi1>, vector<16x30xf32>
    %135 = arith.addf %124, %134 : vector<16x30xf32>
    %c0_15 = arith.constant 0 : index
    %c0_16 = arith.constant 0 : index
    %136 = vector.load %arg3[%c0_15, %c0_16] : memref<30x256xf32, #tpu.memory_space<vmem>>, vector<30x256xf32>
    %cst_17 = arith.constant dense<0.000000e+00> : vector<16x256xf32>
    %137 = tpu.matmul %135, %136, %cst_17 {dimension_numbers = #tpu.dot_dimension_numbers<[1], [0], [0], [1], [0, 0, 1, 1], [], []>} : vector<16x30xf32>, vector<30x256xf32>, vector<16x256xf32> -> vector<16x256xf32>
    %c0_18 = arith.constant 0 : index
    %c0_19 = arith.constant 0 : index
    %138 = vector.load %arg4[%c0_18, %c0_19] : memref<1x256xf32, #tpu.memory_space<vmem>>, vector<1x256xf32>
    %139 = vector.broadcast %138 : vector<1x256xf32> to vector<16x256xf32>
    %140 = arith.addf %137, %139 : vector<16x256xf32>
    %141 = vector.extract_strided_slice %140 {offsets = [0, 0], sizes = [16, 192], strides = [1, 1]} : vector<16x256xf32> to vector<16x192xf32>
    %142 = vector.extract_strided_slice %140 {offsets = [0, 192], sizes = [16, 16], strides = [1, 1]} : vector<16x256xf32> to vector<16x16xf32>
    %143 = vector.extract_strided_slice %140 {offsets = [0, 208], sizes = [16, 32], strides = [1, 1]} : vector<16x256xf32> to vector<16x32xf32>
    %144 = vector.extract_strided_slice %140 {offsets = [0, 240], sizes = [16, 1], strides = [1, 1]} : vector<16x256xf32> to vector<16x1xf32>
    %145 = arith.mulf %142, %142 : vector<16x16xf32>
    %cst_20 = arith.constant dense<0.000000e+00> : vector<16xf32>
    %146 = vector.multi_reduction <add>, %145, %cst_20 [1] : vector<16x16xf32> to vector<16xf32>
    %147 = vector.shape_cast %146 : vector<16xf32> to vector<16x1xf32>
    %148 = arith.mulf %141, %141 : vector<16x192xf32>
    %cst_21 = arith.constant dense<0.000000e+00> : vector<16xf32>
    %149 = vector.multi_reduction <add>, %148, %cst_21 [1] : vector<16x192xf32> to vector<16xf32>
    %150 = vector.shape_cast %149 : vector<16xf32> to vector<16x1xf32>
    %151 = arith.subf %147, %150 : vector<16x1xf32>
    %cst_22 = arith.constant 5.000000e-01 : f32
    %152 = vector.broadcast %cst_22 : f32 to vector<16x1xf32>
    %153 = arith.mulf %152, %151 : vector<16x1xf32>
    %cst_23 = arith.constant 0.000000e+00 : f32
    %154 = vector.broadcast %cst_23 : f32 to vector<16x32xf32>
    %155 = arith.maximumf %143, %154 : vector<16x32xf32>
    %c0_24 = arith.constant 0 : index
    %c0_25 = arith.constant 0 : index
    %156 = vector.load %arg5[%c0_24, %c0_25] : memref<32x64xf32, #tpu.memory_space<vmem>>, vector<32x64xf32>
    %cst_26 = arith.constant dense<0.000000e+00> : vector<16x64xf32>
    %157 = tpu.matmul %155, %156, %cst_26 {dimension_numbers = #tpu.dot_dimension_numbers<[1], [0], [0], [1], [0, 0, 1, 1], [], []>} : vector<16x32xf32>, vector<32x64xf32>, vector<16x64xf32> -> vector<16x64xf32>
    %c0_27 = arith.constant 0 : index
    %c0_28 = arith.constant 0 : index
    %158 = vector.load %arg6[%c0_27, %c0_28] : memref<1x64xf32, #tpu.memory_space<vmem>>, vector<1x64xf32>
    %159 = vector.broadcast %158 : vector<1x64xf32> to vector<16x64xf32>
    %160 = arith.addf %157, %159 : vector<16x64xf32>
    %cst_29 = arith.constant 0.000000e+00 : f32
    %161 = vector.broadcast %cst_29 : f32 to vector<16x64xf32>
    %162 = arith.maximumf %160, %161 : vector<16x64xf32>
    %c0_30 = arith.constant 0 : index
    %c0_31 = arith.constant 0 : index
    %163 = vector.load %arg7[%c0_30, %c0_31] : memref<64x32xf32, #tpu.memory_space<vmem>>, vector<64x32xf32>
    %cst_32 = arith.constant dense<0.000000e+00> : vector<16x32xf32>
    %164 = tpu.matmul %162, %163, %cst_32 {dimension_numbers = #tpu.dot_dimension_numbers<[1], [0], [0], [1], [0, 0, 1, 1], [], []>} : vector<16x64xf32>, vector<64x32xf32>, vector<16x32xf32> -> vector<16x32xf32>
    %c0_33 = arith.constant 0 : index
    %c0_34 = arith.constant 0 : index
    %165 = vector.load %arg8[%c0_33, %c0_34] : memref<1x32xf32, #tpu.memory_space<vmem>>, vector<1x32xf32>
    %166 = vector.broadcast %165 : vector<1x32xf32> to vector<16x32xf32>
    %167 = arith.addf %164, %166 : vector<16x32xf32>
    %cst_35 = arith.constant 0.000000e+00 : f32
    %168 = vector.broadcast %cst_35 : f32 to vector<16x32xf32>
    %169 = arith.maximumf %167, %168 : vector<16x32xf32>
    %c0_36 = arith.constant 0 : index
    %c0_37 = arith.constant 0 : index
    %170 = vector.load %arg9[%c0_36, %c0_37] : memref<1x32xf32, #tpu.memory_space<vmem>>, vector<1x32xf32>
    %171 = vector.broadcast %170 : vector<1x32xf32> to vector<16x32xf32>
    %172 = arith.mulf %169, %171 : vector<16x32xf32>
    %cst_38 = arith.constant dense<0.000000e+00> : vector<16xf32>
    %173 = vector.multi_reduction <add>, %172, %cst_38 [1] : vector<16x32xf32> to vector<16xf32>
    %174 = vector.shape_cast %173 : vector<16xf32> to vector<16x1xf32>
    %c0_39 = arith.constant 0 : index
    %c0_40 = arith.constant 0 : index
    %175 = vector.load %arg10[%c0_39, %c0_40] : memref<1x1xf32, #tpu.memory_space<vmem>>, vector<1x1xf32>
    %176 = vector.broadcast %175 : vector<1x1xf32> to vector<16x1xf32>
    %177 = arith.addf %174, %176 : vector<16x1xf32>
    %cst_41 = arith.constant 0.000000e+00 : f32
    %178 = vector.broadcast %cst_41 : f32 to vector<16x1xf32>
    %179 = arith.maximumf %177, %178 : vector<16x1xf32>
    %180 = arith.addf %144, %153 : vector<16x1xf32>
    %181 = arith.addf %180, %179 : vector<16x1xf32>
    %c0_42 = arith.constant 0 : index
    %c0_43 = arith.constant 0 : index
    %182 = vector.load %arg11[%c0_42, %c0_43] : memref<1x1xf32, #tpu.memory_space<vmem>>, vector<1x1xf32>
    %183 = vector.broadcast %182 : vector<1x1xf32> to vector<16x1xf32>
    %184 = arith.addf %181, %183 : vector<16x1xf32>
    %c0_44 = arith.constant 0 : index
    %c0_45 = arith.constant 0 : index
    %185 = vector.load %arg12[%c0_44, %c0_45] : memref<16x1xf32, #tpu.memory_space<vmem>>, vector<16x1xf32>
    tpu.vector_store %arg12[%c0_44, %c0_45], %184 {strides = array<i32>} : memref<16x1xf32, #tpu.memory_space<vmem>>, vector<16x1xf32>,
    return
  }
  func.func @transform_0(%arg0: i32) -> (i32, i32) {
    %c0_i32 = arith.constant 0 : i32
    %c0_i32_0 = arith.constant 0 : i32
    return %arg0, %c0_i32 : i32, i32
  }
  func.func @transform_1(%arg0: i32) -> (i32, i32) {
    %c0_i32 = arith.constant 0 : i32
    %c0_i32_0 = arith.constant 0 : i32
    return %arg0, %c0_i32 : i32, i32
  }
  func.func @transform_2(%arg0: i32) -> (i32, i32) {
    %c0_i32 = arith.constant 0 : i32
    %c0_i32_0 = arith.constant 0 : i32
    %c0_i32_1 = arith.constant 0 : i32
    return %c0_i32, %c0_i32_0 : i32, i32
  }
  func.func @transform_3(%arg0: i32) -> (i32, i32) {
    %c0_i32 = arith.constant 0 : i32
    %c0_i32_0 = arith.constant 0 : i32
    %c0_i32_1 = arith.constant 0 : i32
    return %c0_i32, %c0_i32_0 : i32, i32
  }
  func.func @transform_4(%arg0: i32) -> (i32, i32) {
    %c0_i32 = arith.constant 0 : i32
    %c0_i32_0 = arith.constant 0 : i32
    %c0_i32_1 = arith.constant 0 : i32
    return %c0_i32, %c0_i32_0 : i32, i32
  }
  func.func @transform_5(%arg0: i32) -> (i32, i32) {
    %c0_i32 = arith.constant 0 : i32
    %c0_i32_0 = arith.constant 0 : i32
    %c0_i32_1 = arith.constant 0 : i32
    return %c0_i32, %c0_i32_0 : i32, i32
  }
  func.func @transform_6(%arg0: i32) -> (i32, i32) {
    %c0_i32 = arith.constant 0 : i32
    %c0_i32_0 = arith.constant 0 : i32
    %c0_i32_1 = arith.constant 0 : i32
    return %c0_i32, %c0_i32_0 : i32, i32
  }
  func.func @transform_7(%arg0: i32) -> (i32, i32) {
    %c0_i32 = arith.constant 0 : i32
    %c0_i32_0 = arith.constant 0 : i32
    %c0_i32_1 = arith.constant 0 : i32
    return %c0_i32, %c0_i32_0 : i32, i32
  }
  func.func @transform_8(%arg0: i32) -> (i32, i32) {
    %c0_i32 = arith.constant 0 : i32
    %c0_i32_0 = arith.constant 0 : i32
    %c0_i32_1 = arith.constant 0 : i32
    return %c0_i32, %c0_i32_0 : i32, i32
  }
  func.func @transform_9(%arg0: i32) -> (i32, i32) {
    %c0_i32 = arith.constant 0 : i32
    %c0_i32_0 = arith.constant 0 : i32
    %c0_i32_1 = arith.constant 0 : i32
    return %c0_i32, %c0_i32_0 : i32, i32
  }
  func.func @transform_10(%arg0: i32) -> (i32, i32) {
    %c0_i32 = arith.constant 0 : i32
    %c0_i32_0 = arith.constant 0 : i32
    %c0_i32_1 = arith.constant 0 : i32
    return %c0_i32, %c0_i32_0 : i32, i32
  }
  func.func @transform_11(%arg0: i32) -> (i32, i32) {
    %c0_i32 = arith.constant 0 : i32
    %c0_i32_0 = arith.constant 0 : i32
    return %arg0, %c0_i32 : i32, i32
  }
}

</mosaic_0001>

<llo_original>
// kernel: tpu_custom_call.1
$region0: #{tpu_custom_call.1}
  #allocation0 [shape = 'u32[]', space=smem, size = 0x4, offset = 0x4, fixed_abs, tag = 'smem constant byte address 0x4 - core index']
  #allocation1 [shape = 'u32[144,128]{1,0:T(1,128)}', space=vmem, size = 0x12000, scoped, tag = 'internal scratch']
  #allocation2 [shape = 'f32[1,1]{1,0:T(1,128)S(1)}', space=vmem, size = 0x200, scoped, tag = 'scoped memory for tpu_custom_call.1']
  #allocation3 [shape = 'f32[1,1]{1,0:T(1,128)S(1)}', space=vmem, size = 0x200, scoped, tag = 'scoped memory for tpu_custom_call.1']
  %s0 = inlined_call_operand.vmem [shape: s32[48,12], index: 0, kind: input, shape index: {}]
  %s1 = inlined_call_operand.vmem [shape: f32[48,12], index: 1, kind: input, shape index: {}]
  %s2 = inlined_call_operand.vmem [shape: f32[30,256], index: 2, kind: input, shape index: {}]
  %s3 = inlined_call_operand.vmem [shape: f32[1,256], index: 3, kind: input, shape index: {}]
  %s4 = inlined_call_operand.vmem [shape: f32[32,64], index: 4, kind: input, shape index: {}]
  %s5 = inlined_call_operand.vmem [shape: f32[1,64], index: 5, kind: input, shape index: {}]
  %s6 = inlined_call_operand.vmem [shape: f32[64,32], index: 6, kind: input, shape index: {}]
  %s7 = inlined_call_operand.vmem [shape: f32[1,32], index: 7, kind: input, shape index: {}]
  %s8 = inlined_call_operand.vmem [shape: f32[1,32], index: 8, kind: input, shape index: {}]
  %s9 = inlined_call_operand.<no memory space> [shape: f32[1,1], index: 9, kind: input, shape index: {}]
  %s10 = inlined_call_operand.<no memory space> [shape: f32[1,1], index: 10, kind: input, shape index: {}]
  %s11 = inlined_call_operand.vmem [shape: f32[48,1], index: 11, kind: output, shape index: {}]
  %s12 = sld [smem:[#allocation0]]
  $region77: #{tpu_custom_call.1} parent=0
    _
  %s14 = ssub.s32 1, %s12
  %s15 = scalar_select 0, %s14, %s12
  %v16 = vstv %s9
  %17 = vst [vmem:[#allocation2] sm:$0x1] %v16
  %v18 = vstv %s10
  %19 = vst [vmem:[#allocation3] sm:$0x1] %v18
  loop: start=0, step=1, limit=5
  $region2: #{tpu_custom_call.1} parent=0 // loop_pre_header
    _
  $region3: #{tpu_custom_call.1} parent=0 // loop_header
    %s21 = sphi 0, %s25
    %p22 = scmp.ge.s32.totalorder %s21, 5
    %s31 = sphi 0, %s33
    %s34 = sphi 0, %s31
    %s35 = sphi 0, %s34
    %s51 = sphi 0, %s35
    %s57 = sphi 0, %s59
    %s60 = sphi 0, %s57
    %s61 = sphi 0, %s60
    %s77 = sphi 0, %s61
    %s81 = sphi 0, %s81
    %s83 = sphi 0, %s81
    %s84 = sphi 0, %s83
    %s98 = sphi 0, %s84
    %s102 = sphi 0, %s102
    %s104 = sphi 0, %s102
    %s105 = sphi 0, %s104
    %s119 = sphi 0, %s105
    %s123 = sphi 0, %s123
    %s125 = sphi 0, %s123
    %s126 = sphi 0, %s125
    %s140 = sphi 0, %s126
    %s144 = sphi 0, %s144
    %s146 = sphi 0, %s144
    %s147 = sphi 0, %s146
    %s161 = sphi 0, %s147
    %s165 = sphi 0, %s165
    %s167 = sphi 0, %s165
    %s168 = sphi 0, %s167
    %s182 = sphi 0, %s168
    %s186 = sphi 0, %s186
    %s188 = sphi 0, %s186
    %s189 = sphi 0, %s188
    %s203 = sphi 0, %s189
    %s207 = sphi 0, %s207
    %s209 = sphi 0, %s207
    %s210 = sphi 0, %s209
    %s224 = sphi 0, %s210
    %s228 = sphi 0, %s228
    %s230 = sphi 0, %s228
    %s231 = sphi 0, %s230
    %s245 = sphi 0, %s231
    %s249 = sphi 0, %s249
    %s251 = sphi 0, %s249
    %s252 = sphi 0, %s251
    %s266 = sphi 0, %s252
    %s272 = sphi 0, %s274
    %s275 = sphi 0, %s272
    %s276 = sphi 0, %s275
    %s292 = sphi 0, %s276
  $region4: #{tpu_custom_call.1} parent=0 // loop_header_branch
    %24 = sbr.rel (%p22) target = $region8
  $region5: #{tpu_custom_call.1} parent=0 // loop_body
    %s26 = ssub.s32 %s21, 1
    %s27 = ssub.s32 %s21, 2
    %s28 = sadd.s32 %s21, 1
    %s29 = ssub.s32 %s21, %s28
    %p30 = scmp.eq.s32.totalorder %s29, 0
    %s32 = sadd.s32 %s31, 1
    %s33 = scalar_select %p30, %s31, %s32
    %p36 = pneg %p30
    %p37 = scmp.eq.s32.totalorder %s21, 2
    %p38 = por %p36, %p37
    %p39 = scmp.ne.s32.totalorder %s31, %s34
    %p40 = scmp.eq.s32.totalorder %s21, 0
    %p41 = por %p39, %p40
    %p42 = scmp.ne.s32.totalorder %s31, %s34
    %p43 = scmp.eq.s32.totalorder %s26, 2
    %p44 = por %p42, %p43
    %p45 = scmp.ne.s32.totalorder %s34, %s35
    %p46 = scmp.eq.s32.totalorder %s26, 0
    %p47 = por %p45, %p46
    %p48 = scmp.ne.s32.totalorder %s34, %s35
    %p49 = scmp.eq.s32.totalorder %s27, 2
    %p50 = por %p48, %p49
    %p52 = scmp.ne.s32.totalorder %s35, %s51
    %p53 = scmp.eq.s32.totalorder %s27, 0
    %p54 = por %p52, %p53
    %s55 = ssub.s32 %s21, %s28
    %p56 = scmp.eq.s32.totalorder %s55, 0
    %s58 = sadd.s32 %s57, 1
    %s59 = scalar_select %p56, %s57, %s58
    %p62 = pneg %p56
    %p63 = scmp.eq.s32.totalorder %s21, 2
    %p64 = por %p62, %p63
    %p65 = scmp.ne.s32.totalorder %s57, %s60
    %p66 = scmp.eq.s32.totalorder %s21, 0
    %p67 = por %p65, %p66
    %p68 = scmp.ne.s32.totalorder %s57, %s60
    %p69 = scmp.eq.s32.totalorder %s26, 2
    %p70 = por %p68, %p69
    %p71 = scmp.ne.s32.totalorder %s60, %s61
    %p72 = scmp.eq.s32.totalorder %s26, 0
    %p73 = por %p71, %p72
    %p74 = scmp.ne.s32.totalorder %s60, %s61
    %p75 = scmp.eq.s32.totalorder %s27, 2
    %p76 = por %p74, %p75
    %p78 = scmp.ne.s32.totalorder %s61, %s77
    %p79 = scmp.eq.s32.totalorder %s27, 0
    %p80 = por %p78, %p79
    %s82 = sadd.s32 %s81, 1
    %p85 = scmp.eq.s32.totalorder %s21, 2
    %p86 = scmp.ne.s32.totalorder %s81, %s83
    %p87 = scmp.eq.s32.totalorder %s21, 0
    %p88 = por %p86, %p87
    %p89 = scmp.ne.s32.totalorder %s81, %s83
    %p90 = scmp.eq.s32.totalorder %s26, 2
    %p91 = por %p89, %p90
    %p92 = scmp.ne.s32.totalorder %s83, %s84
    %p93 = scmp.eq.s32.totalorder %s26, 0
    %p94 = por %p92, %p93
    %p95 = scmp.ne.s32.totalorder %s83, %s84
    %p96 = scmp.eq.s32.totalorder %s27, 2
    %p97 = por %p95, %p96
    %p99 = scmp.ne.s32.totalorder %s84, %s98
    %p100 = scmp.eq.s32.totalorder %s27, 0
    %p101 = por %p99, %p100
    %s103 = sadd.s32 %s102, 1
    %p106 = scmp.eq.s32.totalorder %s21, 2
    %p107 = scmp.ne.s32.totalorder %s102, %s104
    %p108 = scmp.eq.s32.totalorder %s21, 0
    %p109 = por %p107, %p108
    %p110 = scmp.ne.s32.totalorder %s102, %s104
    %p111 = scmp.eq.s32.totalorder %s26, 2
    %p112 = por %p110, %p111
    %p113 = scmp.ne.s32.totalorder %s104, %s105
    %p114 = scmp.eq.s32.totalorder %s26, 0
    %p115 = por %p113, %p114
    %p116 = scmp.ne.s32.totalorder %s104, %s105
    %p117 = scmp.eq.s32.totalorder %s27, 2
    %p118 = por %p116, %p117
    %p120 = scmp.ne.s32.totalorder %s105, %s119
    %p121 = scmp.eq.s32.totalorder %s27, 0
    %p122 = por %p120, %p121
    %s124 = sadd.s32 %s123, 1
    %p127 = scmp.eq.s32.totalorder %s21, 2
    %p128 = scmp.ne.s32.totalorder %s123, %s125
    %p129 = scmp.eq.s32.totalorder %s21, 0
    %p130 = por %p128, %p129
    %p131 = scmp.ne.s32.totalorder %s123, %s125
    %p132 = scmp.eq.s32.totalorder %s26, 2
    %p133 = por %p131, %p132
    %p134 = scmp.ne.s32.totalorder %s125, %s126
    %p135 = scmp.eq.s32.totalorder %s26, 0
    %p136 = por %p134, %p135
    %p137 = scmp.ne.s32.totalorder %s125, %s126
    %p138 = scmp.eq.s32.totalorder %s27, 2
    %p139 = por %p137, %p138
    %p141 = scmp.ne.s32.totalorder %s126, %s140
    %p142 = scmp.eq.s32.totalorder %s27, 0
    %p143 = por %p141, %p142
    %s145 = sadd.s32 %s144, 1
    %p148 = scmp.eq.s32.totalorder %s21, 2
    %p149 = scmp.ne.s32.totalorder %s144, %s146
    %p150 = scmp.eq.s32.totalorder %s21, 0
    %p151 = por %p149, %p150
    %p152 = scmp.ne.s32.totalorder %s144, %s146
    %p153 = scmp.eq.s32.totalorder %s26, 2
    %p154 = por %p152, %p153
    %p155 = scmp.ne.s32.totalorder %s146, %s147
    %p156 = scmp.eq.s32.totalorder %s26, 0
    %p157 = por %p155, %p156
    %p158 = scmp.ne.s32.totalorder %s146, %s147
    %p159 = scmp.eq.s32.totalorder %s27, 2
    %p160 = por %p158, %p159
    %p162 = scmp.ne.s32.totalorder %s147, %s161
    %p163 = scmp.eq.s32.totalorder %s27, 0
    %p164 = por %p162, %p163
    %s166 = sadd.s32 %s165, 1
    %p169 = scmp.eq.s32.totalorder %s21, 2
    %p170 = scmp.ne.s32.totalorder %s165, %s167
    %p171 = scmp.eq.s32.totalorder %s21, 0
    %p172 = por %p170, %p171
    %p173 = scmp.ne.s32.totalorder %s165, %s167
    %p174 = scmp.eq.s32.totalorder %s26, 2
    %p175 = por %p173, %p174
    %p176 = scmp.ne.s32.totalorder %s167, %s168
    %p177 = scmp.eq.s32.totalorder %s26, 0
    %p178 = por %p176, %p177
    %p179 = scmp.ne.s32.totalorder %s167, %s168
    %p180 = scmp.eq.s32.totalorder %s27, 2
    %p181 = por %p179, %p180
    %p183 = scmp.ne.s32.totalorder %s168, %s182
    %p184 = scmp.eq.s32.totalorder %s27, 0
    %p185 = por %p183, %p184
    %s187 = sadd.s32 %s186, 1
    %p190 = scmp.eq.s32.totalorder %s21, 2
    %p191 = scmp.ne.s32.totalorder %s186, %s188
    %p192 = scmp.eq.s32.totalorder %s21, 0
    %p193 = por %p191, %p192
    %p194 = scmp.ne.s32.totalorder %s186, %s188
    %p195 = scmp.eq.s32.totalorder %s26, 2
    %p196 = por %p194, %p195
    %p197 = scmp.ne.s32.totalorder %s188, %s189
    %p198 = scmp.eq.s32.totalorder %s26, 0
    %p199 = por %p197, %p198
    %p200 = scmp.ne.s32.totalorder %s188, %s189
    %p201 = scmp.eq.s32.totalorder %s27, 2
    %p202 = por %p200, %p201
    %p204 = scmp.ne.s32.totalorder %s189, %s203
    %p205 = scmp.eq.s32.totalorder %s27, 0
    %p206 = por %p204, %p205
    %s208 = sadd.s32 %s207, 1
    %p211 = scmp.eq.s32.totalorder %s21, 2
    %p212 = scmp.ne.s32.totalorder %s207, %s209
    %p213 = scmp.eq.s32.totalorder %s21, 0
    %p214 = por %p212, %p213
    %p215 = scmp.ne.s32.totalorder %s207, %s209
    %p216 = scmp.eq.s32.totalorder %s26, 2
    %p217 = por %p215, %p216
    %p218 = scmp.ne.s32.totalorder %s209, %s210
    %p219 = scmp.eq.s32.totalorder %s26, 0
    %p220 = por %p218, %p219
    %p221 = scmp.ne.s32.totalorder %s209, %s210
    %p222 = scmp.eq.s32.totalorder %s27, 2
    %p223 = por %p221, %p222
    %p225 = scmp.ne.s32.totalorder %s210, %s224
    %p226 = scmp.eq.s32.totalorder %s27, 0
    %p227 = por %p225, %p226
    %s229 = sadd.s32 %s228, 1
    %p232 = scmp.eq.s32.totalorder %s21, 2
    %p233 = scmp.ne.s32.totalorder %s228, %s230
    %p234 = scmp.eq.s32.totalorder %s21, 0
    %p235 = por %p233, %p234
    %p236 = scmp.ne.s32.totalorder %s228, %s230
    %p237 = scmp.eq.s32.totalorder %s26, 2
    %p238 = por %p236, %p237
    %p239 = scmp.ne.s32.totalorder %s230, %s231
    %p240 = scmp.eq.s32.totalorder %s26, 0
    %p241 = por %p239, %p240
    %p242 = scmp.ne.s32.totalorder %s230, %s231
    %p243 = scmp.eq.s32.totalorder %s27, 2
    %p244 = por %p242, %p243
    %p246 = scmp.ne.s32.totalorder %s231, %s245
    %p247 = scmp.eq.s32.totalorder %s27, 0
    %p248 = por %p246, %p247
    %s250 = sadd.s32 %s249, 1
    %p253 = scmp.eq.s32.totalorder %s21, 2
    %p254 = scmp.ne.s32.totalorder %s249, %s251
    %p255 = scmp.eq.s32.totalorder %s21, 0
    %p256 = por %p254, %p255
    %p257 = scmp.ne.s32.totalorder %s249, %s251
    %p258 = scmp.eq.s32.totalorder %s26, 2
    %p259 = por %p257, %p258
    %p260 = scmp.ne.s32.totalorder %s251, %s252
    %p261 = scmp.eq.s32.totalorder %s26, 0
    %p262 = por %p260, %p261
    %p263 = scmp.ne.s32.totalorder %s251, %s252
    %p264 = scmp.eq.s32.totalorder %s27, 2
    %p265 = por %p263, %p264
    %p267 = scmp.ne.s32.totalorder %s252, %s266
    %p268 = scmp.eq.s32.totalorder %s27, 0
    %p269 = por %p267, %p268
    %s270 = ssub.s32 %s21, %s28
    %p271 = scmp.eq.s32.totalorder %s270, 0
    %s273 = sadd.s32 %s272, 1
    %s274 = scalar_select %p271, %s272, %s273
    %p277 = pneg %p271
    %p278 = scmp.eq.s32.totalorder %s21, 2
    %p279 = por %p277, %p278
    %p280 = scmp.ne.s32.totalorder %s272, %s275
    %p281 = scmp.eq.s32.totalorder %s21, 0
    %p282 = por %p280, %p281
    %p283 = scmp.ne.s32.totalorder %s272, %s275
    %p284 = scmp.eq.s32.totalorder %s26, 2
    %p285 = por %p283, %p284
    %p286 = scmp.ne.s32.totalorder %s275, %s276
    %p287 = scmp.eq.s32.totalorder %s26, 0
    %p288 = por %p286, %p287
    %p289 = scmp.ne.s32.totalorder %s275, %s276
    %p290 = scmp.eq.s32.totalorder %s27, 2
    %p291 = por %p289, %p290
    %p293 = scmp.ne.s32.totalorder %s276, %s292
    %p294 = scmp.eq.s32.totalorder %s27, 0
    %p295 = por %p293, %p294
    %p296 = scmp.le.s32.totalorder 1, %s21
    %p297 = scmp.lt.s32.totalorder %s21, 4
    %p298 = pnand %p296, %p297
    %p299 = pneg %p298
    // Predicated region
    $region9: #{tpu_custom_call.1} parent=5 // pred_check
      _
    $region10: #{tpu_custom_call.1} parent=5 // pred_check_branch
      %301 = sbr.rel (%p298) target = $region12
    $region11: #{tpu_custom_call.1} parent=5 // pred_region
      %s302 = ssub.s32 %s21, 1
      // Predicated region
      $region13: #{tpu_custom_call.1} parent=11 // pred_check
        %p303 = pneg %p94
      $region14: #{tpu_custom_call.1} parent=11 // pred_check_branch
        %305 = sbr.rel (%p303) target = $region16
      $region15: #{tpu_custom_call.1} parent=11 // pred_region
        _
      $region16: #{tpu_custom_call.1} parent=11 // pred_fallthru
        _
      // Predicated region
      $region17: #{tpu_custom_call.1} parent=11 // pred_check
        %p306 = pneg %p115
      $region18: #{tpu_custom_call.1} parent=11 // pred_check_branch
        %308 = sbr.rel (%p306) target = $region20
      $region19: #{tpu_custom_call.1} parent=11 // pred_region
        _
      $region20: #{tpu_custom_call.1} parent=11 // pred_fallthru
        _
      // Predicated region
      $region21: #{tpu_custom_call.1} parent=11 // pred_check
        %p309 = pneg %p136
      $region22: #{tpu_custom_call.1} parent=11 // pred_check_branch
        %311 = sbr.rel (%p309) target = $region24
      $region23: #{tpu_custom_call.1} parent=11 // pred_region
        _
      $region24: #{tpu_custom_call.1} parent=11 // pred_fallthru
        _
      // Predicated region
      $region25: #{tpu_custom_call.1} parent=11 // pred_check
        %p312 = pneg %p157
      $region26: #{tpu_custom_call.1} parent=11 // pred_check_branch
        %314 = sbr.rel (%p312) target = $region28
      $region27: #{tpu_custom_call.1} parent=11 // pred_region
        _
      $region28: #{tpu_custom_call.1} parent=11 // pred_fallthru
        _
      // Predicated region
      $region29: #{tpu_custom_call.1} parent=11 // pred_check
        %p315 = pneg %p178
      $region30: #{tpu_custom_call.1} parent=11 // pred_check_branch
        %317 = sbr.rel (%p315) target = $region32
      $region31: #{tpu_custom_call.1} parent=11 // pred_region
        _
      $region32: #{tpu_custom_call.1} parent=11 // pred_fallthru
        _
      // Predicated region
      $region33: #{tpu_custom_call.1} parent=11 // pred_check
        %p318 = pneg %p199
      $region34: #{tpu_custom_call.1} parent=11 // pred_check_branch
        %320 = sbr.rel (%p318) target = $region36
      $region35: #{tpu_custom_call.1} parent=11 // pred_region
        _
      $region36: #{tpu_custom_call.1} parent=11 // pred_fallthru
        _
      // Predicated region
      $region37: #{tpu_custom_call.1} parent=11 // pred_check
        %p321 = pneg %p220
      $region38: #{tpu_custom_call.1} parent=11 // pred_check_branch
        %323 = sbr.rel (%p321) target = $region40
      $region39: #{tpu_custom_call.1} parent=11 // pred_region
        _
      $region40: #{tpu_custom_call.1} parent=11 // pred_fallthru
        _
      // Predicated region
      $region41: #{tpu_custom_call.1} parent=11 // pred_check
        %p324 = pneg %p241
      $region42: #{tpu_custom_call.1} parent=11 // pred_check_branch
        %326 = sbr.rel (%p324) target = $region44
      $region43: #{tpu_custom_call.1} parent=11 // pred_region
        _
      $region44: #{tpu_custom_call.1} parent=11 // pred_fallthru
        _
      // Predicated region
      $region45: #{tpu_custom_call.1} parent=11 // pred_check
        %p327 = pneg %p262
      $region46: #{tpu_custom_call.1} parent=11 // pred_check_branch
        %329 = sbr.rel (%p327) target = $region48
      $region47: #{tpu_custom_call.1} parent=11 // pred_region
        _
      $region48: #{tpu_custom_call.1} parent=11 // pred_fallthru
        _
    $region12: #{tpu_custom_call.1} parent=5 // pred_fallthru
      _
    %p330 = scmp.lt.s32.totalorder %s21, 3
    // Predicated region
    $region49: #{tpu_custom_call.1} parent=5 // pred_check
      %p331 = pneg %p330
    $region50: #{tpu_custom_call.1} parent=5 // pred_check_branch
      %333 = sbr.rel (%p331) target = $region52
    $region51: #{tpu_custom_call.1} parent=5 // pred_region
      // Predicated region
      $region53: #{tpu_custom_call.1} parent=51 // pred_check
        %p334 = pneg %p41
      $region54: #{tpu_custom_call.1} parent=51 // pred_check_branch
        %336 = sbr.rel (%p334) target = $region56
      $region55: #{tpu_custom_call.1} parent=51 // pred_region
        %s337 = smul.u32 2, %s21
        %p338 = scmp.lt.s32.totalorder %s337, 5
        %s339 = scalar_select %p338, %s337, 5
        %s340 = smul.addr %s339, 8
        %s341 = scalar_lea.vmem %s0, %s340
        %s342 = smul.u32 2, %s21
      $region56: #{tpu_custom_call.1} parent=51 // pred_fallthru
        _
      // Predicated region
      $region57: #{tpu_custom_call.1} parent=51 // pred_check
        %p343 = pneg %p67
      $region58: #{tpu_custom_call.1} parent=51 // pred_check_branch
        %345 = sbr.rel (%p343) target = $region60
      $region59: #{tpu_custom_call.1} parent=51 // pred_region
        %s346 = smul.u32 2, %s21
        %p347 = scmp.lt.s32.totalorder %s346, 5
        %s348 = scalar_select %p347, %s346, 5
        %s349 = smul.addr %s348, 8
        %s350 = scalar_lea.vmem %s1, %s349
        %s351 = smul.u32 2, %s21
      $region60: #{tpu_custom_call.1} parent=51 // pred_fallthru
        _
    $region52: #{tpu_custom_call.1} parent=5 // pred_fallthru
      _
    %p352 = scmp.le.s32.totalorder 1, %s21
    %p353 = scmp.lt.s32.totalorder %s21, 4
    %p354 = pnand %p352, %p353
    %p355 = pneg %p354
    // Predicated region
    $region61: #{tpu_custom_call.1} parent=5 // pred_check
      _
    $region62: #{tpu_custom_call.1} parent=5 // pred_check_branch
      %357 = sbr.rel (%p354) target = $region64
    $region63: #{tpu_custom_call.1} parent=5 // pred_region
      %s358 = ssub.s32 %s21, 1
      %s359 = smul.u32 2, %s26
      %p360 = scmp.lt.s32.totalorder %s359, 5
      %s361 = scalar_select %p360, %s359, 5
      %s362 = smul.addr %s361, 8
      %s363 = scalar_lea.vmem %s0, %s362
      %p364 = pneg %p47
      %p365 = pneg %p44
      %s366 = smul.u32 2, %s26
      %p367 = scmp.lt.s32.totalorder %s366, 5
      %s368 = scalar_select %p367, %s366, 5
      %s369 = smul.addr %s368, 8
      %s370 = scalar_lea.vmem %s1, %s369
      %p371 = pneg %p73
      %p372 = pneg %p70
      %p373 = pneg %p94
      %p374 = pneg %p91
      %p375 = pneg %p115
      %p376 = pneg %p112
      %p377 = pneg %p136
      %p378 = pneg %p133
      %p379 = pneg %p157
      %p380 = pneg %p154
      %p381 = pneg %p178
      %p382 = pneg %p175
      %p383 = pneg %p199
      %p384 = pneg %p196
      %p385 = pneg %p220
      %p386 = pneg %p217
      %p387 = pneg %p241
      %p388 = pneg %p238
      %p389 = pneg %p262
      %p390 = pneg %p259
      %p391 = pneg %p288
      %p392 = pneg %p285
      %s393 = smul.u32 2, %s26
      %p394 = scmp.lt.s32.totalorder %s393, 5
      %s395 = scalar_select %p394, %s393, 5
      %s396 = smul.addr %s395, 8
      %s397 = scalar_lea.vmem %s11, %s396
      %s398 = smul.u32 2, %s26
      %p399 = scmp.lt.s32.totalorder %s398, 5
      %s400 = scalar_select %p399, %s398, 5
      %s401 = smul.addr %s400, 8
      %s402 = scalar_lea.vmem %s0, %s401
      %s403 = smul.u32 2, %s26
      %s404 = smul.u32 2, %s26
      %p405 = scmp.lt.s32.totalorder %s404, 5
      %s406 = scalar_select %p405, %s404, 5
      %s407 = smul.addr %s406, 8
      %s408 = scalar_lea.vmem %s1, %s407
      %s409 = smul.u32 2, %s26
      %s410 = smul.u32 2, %s26
      %p411 = scmp.lt.s32.totalorder %s410, 5
      %s412 = scalar_select %p411, %s410, 5
      %s413 = smul.addr %s412, 8
      %s414 = scalar_lea.vmem %s11, %s413
      %s415 = smul.u32 2, %s26
      %v416 = vld [vmem:[%s402] sm:$0xff]
      %v417 = vld [vmem:[%s402 + $0x8] sm:$0xff]
      %v418 = vld [vmem:[%s408] sm:$0xff]
      %v419 = vld [vmem:[%s408 + $0x8] sm:$0xff]
      %v420 = vlaneseq
      %v421 = vand.u32 %v420, 127
      %422 = vset.pattern.permute.xlu0 0
      %423 = vperm.xlu0 %422, %v416
      %v424 = vpop.permute.xlu0 %423
      %425 = vset.pattern.permute.xlu0 0
      %426 = vperm.xlu0 %425, %v417
      %v427 = vpop.permute.xlu0 %426
      %vm428 = vcmp.eq.s32.totalorder %v421, %v424
      %vm429 = vcmp.eq.s32.totalorder %v421, %v427
      %431 = vset.pattern.permute.xlu0 0
      %432 = vperm.xlu0 %431, %v418
      %v433 = vpop.permute.xlu0 %432
      %436 = vset.pattern.permute.xlu0 0
      %437 = vperm.xlu0 %436, %v419
      %v438 = vpop.permute.xlu0 %437
      %v440 = vsel %vm428, %v433, 0.0
      %v441 = vsel %vm429, %v438, 0.0
      %v442 = vadd.f32 %v440, 0.0
      %v443 = vadd.f32 %v441, 0.0
      %v444 = vadd.s32 %v416, 6
      %v445 = vadd.s32 %v417, 6
      %446 = vset.pattern.permute.xlu0 1
      %447 = vperm.xlu0 %446, %v444
      %v448 = vpop.permute.xlu0 %447
      %449 = vset.pattern.permute.xlu0 1
      %450 = vperm.xlu0 %449, %v445
      %v451 = vpop.permute.xlu0 %450
      %vm452 = vcmp.eq.s32.totalorder %v421, %v448
      %vm453 = vcmp.eq.s32.totalorder %v421, %v451
      %454 = vset.pattern.permute.xlu0 1
      %455 = vperm.xlu0 %454, %v418
      %v456 = vpop.permute.xlu0 %455
      %458 = vset.pattern.permute.xlu0 1
      %459 = vperm.xlu0 %458, %v419
      %v460 = vpop.permute.xlu0 %459
      %v462 = vsel %vm452, %v456, 0.0
      %v463 = vsel %vm453, %v460, 0.0
      %v464 = vadd.f32 %v442, %v462
      %v465 = vadd.f32 %v443, %v463
      %v466 = vadd.s32 %v416, 16
      %v467 = vadd.s32 %v417, 16
      %468 = vset.pattern.permute.xlu0 2
      %469 = vperm.xlu0 %468, %v466
      %v470 = vpop.permute.xlu0 %469
      %471 = vset.pattern.permute.xlu0 2
      %472 = vperm.xlu0 %471, %v467
      %v473 = vpop.permute.xlu0 %472
      %vm474 = vcmp.eq.s32.totalorder %v421, %v470
      %vm475 = vcmp.eq.s32.totalorder %v421, %v473
      %476 = vset.pattern.permute.xlu0 2
      %477 = vperm.xlu0 %476, %v418
      %v478 = vpop.permute.xlu0 %477
      %480 = vset.pattern.permute.xlu0 2
      %481 = vperm.xlu0 %480, %v419
      %v482 = vpop.permute.xlu0 %481
      %v484 = vsel %vm474, %v478, 0.0
      %v485 = vsel %vm475, %v482, 0.0
      %v486 = vadd.f32 %v464, %v484
      %v487 = vadd.f32 %v465, %v485
      %v488 = vadd.s32 %v416, 18
      %v489 = vadd.s32 %v417, 18
      %490 = vset.pattern.permute.xlu0 3
      %491 = vperm.xlu0 %490, %v488
      %v492 = vpop.permute.xlu0 %491
      %493 = vset.pattern.permute.xlu0 3
      %494 = vperm.xlu0 %493, %v489
      %v495 = vpop.permute.xlu0 %494
      %vm496 = vcmp.eq.s32.totalorder %v421, %v492
      %vm497 = vcmp.eq.s32.totalorder %v421, %v495
      %498 = vset.pattern.permute.xlu0 3
      %499 = vperm.xlu0 %498, %v418
      %v500 = vpop.permute.xlu0 %499
      %502 = vset.pattern.permute.xlu0 3
      %503 = vperm.xlu0 %502, %v419
      %v504 = vpop.permute.xlu0 %503
      %v506 = vsel %vm496, %v500, 0.0
      %v507 = vsel %vm497, %v504, 0.0
      %v508 = vadd.f32 %v486, %v506
      %v509 = vadd.f32 %v487, %v507
      %v510 = vadd.s32 %v416, 19
      %v511 = vadd.s32 %v417, 19
      %512 = vset.pattern.permute.xlu0 4
      %513 = vperm.xlu0 %512, %v510
      %v514 = vpop.permute.xlu0 %513
      %515 = vset.pattern.permute.xlu0 4
      %516 = vperm.xlu0 %515, %v511
      %v517 = vpop.permute.xlu0 %516
      %vm518 = vcmp.eq.s32.totalorder %v421, %v514
      %vm519 = vcmp.eq.s32.totalorder %v421, %v517
      %520 = vset.pattern.permute.xlu0 4
      %521 = vperm.xlu0 %520, %v418
      %v522 = vpop.permute.xlu0 %521
      %524 = vset.pattern.permute.xlu0 4
      %525 = vperm.xlu0 %524, %v419
      %v526 = vpop.permute.xlu0 %525
      %v528 = vsel %vm518, %v522, 0.0
      %v529 = vsel %vm519, %v526, 0.0
      %v530 = vadd.f32 %v508, %v528
      %v531 = vadd.f32 %v509, %v529
      %v532 = vadd.s32 %v416, 20
      %v533 = vadd.s32 %v417, 20
      %534 = vset.pattern.permute.xlu0 5
      %535 = vperm.xlu0 %534, %v532
      %v536 = vpop.permute.xlu0 %535
      %537 = vset.pattern.permute.xlu0 5
      %538 = vperm.xlu0 %537, %v533
      %v539 = vpop.permute.xlu0 %538
      %vm540 = vcmp.eq.s32.totalorder %v421, %v536
      %vm541 = vcmp.eq.s32.totalorder %v421, %v539
      %542 = vset.pattern.permute.xlu0 5
      %543 = vperm.xlu0 %542, %v418
      %v544 = vpop.permute.xlu0 %543
      %546 = vset.pattern.permute.xlu0 5
      %547 = vperm.xlu0 %546, %v419
      %v548 = vpop.permute.xlu0 %547
      %v550 = vsel %vm540, %v544, 0.0
      %v551 = vsel %vm541, %v548, 0.0
      %v552 = vadd.f32 %v530, %v550
      %v553 = vadd.f32 %v531, %v551
      %v554 = vadd.s32 %v416, 21
      %v555 = vadd.s32 %v417, 21
      %556 = vset.pattern.permute.xlu0 6
      %557 = vperm.xlu0 %556, %v554
      %v558 = vpop.permute.xlu0 %557
      %559 = vset.pattern.permute.xlu0 6
      %560 = vperm.xlu0 %559, %v555
      %v561 = vpop.permute.xlu0 %560
      %vm562 = vcmp.eq.s32.totalorder %v421, %v558
      %vm563 = vcmp.eq.s32.totalorder %v421, %v561
      %564 = vset.pattern.permute.xlu0 6
      %565 = vperm.xlu0 %564, %v418
      %v566 = vpop.permute.xlu0 %565
      %568 = vset.pattern.permute.xlu0 6
      %569 = vperm.xlu0 %568, %v419
      %v570 = vpop.permute.xlu0 %569
      %v572 = vsel %vm562, %v566, 0.0
      %v573 = vsel %vm563, %v570, 0.0
      %v574 = vadd.f32 %v552, %v572
      %v575 = vadd.f32 %v553, %v573
      %v576 = vadd.s32 %v416, 22
      %v577 = vadd.s32 %v417, 22
      %578 = vset.pattern.permute.xlu0 7
      %579 = vperm.xlu0 %578, %v576
      %v580 = vpop.permute.xlu0 %579
      %581 = vset.pattern.permute.xlu0 7
      %582 = vperm.xlu0 %581, %v577
      %v583 = vpop.permute.xlu0 %582
      %vm584 = vcmp.eq.s32.totalorder %v421, %v580
      %vm585 = vcmp.eq.s32.totalorder %v421, %v583
      %586 = vset.pattern.permute.xlu0 7
      %587 = vperm.xlu0 %586, %v418
      %v588 = vpop.permute.xlu0 %587
      %590 = vset.pattern.permute.xlu0 7
      %591 = vperm.xlu0 %590, %v419
      %v592 = vpop.permute.xlu0 %591
      %v594 = vsel %vm584, %v588, 0.0
      %v595 = vsel %vm585, %v592, 0.0
      %v596 = vadd.f32 %v574, %v594
      %v597 = vadd.f32 %v575, %v595
      %v598 = vadd.s32 %v416, 24
      %v599 = vadd.s32 %v417, 24
      %600 = vset.pattern.permute.xlu0 8
      %601 = vperm.xlu0 %600, %v598
      %v602 = vpop.permute.xlu0 %601
      %603 = vset.pattern.permute.xlu0 8
      %604 = vperm.xlu0 %603, %v599
      %v605 = vpop.permute.xlu0 %604
      %vm606 = vcmp.eq.s32.totalorder %v421, %v602
      %vm607 = vcmp.eq.s32.totalorder %v421, %v605
      %608 = vset.pattern.permute.xlu0 8
      %609 = vperm.xlu0 %608, %v418
      %v610 = vpop.permute.xlu0 %609
      %612 = vset.pattern.permute.xlu0 8
      %613 = vperm.xlu0 %612, %v419
      %v614 = vpop.permute.xlu0 %613
      %v616 = vsel %vm606, %v610, 0.0
      %v617 = vsel %vm607, %v614, 0.0
      %v618 = vadd.f32 %v596, %v616
      %v619 = vadd.f32 %v597, %v617
      %v620 = vadd.s32 %v416, 25
      %v621 = vadd.s32 %v417, 25
      %622 = vset.pattern.permute.xlu0 9
      %623 = vperm.xlu0 %622, %v620
      %v624 = vpop.permute.xlu0 %623
      %625 = vset.pattern.permute.xlu0 9
      %626 = vperm.xlu0 %625, %v621
      %v627 = vpop.permute.xlu0 %626
      %vm628 = vcmp.eq.s32.totalorder %v421, %v624
      %vm629 = vcmp.eq.s32.totalorder %v421, %v627
      %630 = vset.pattern.permute.xlu0 9
      %631 = vperm.xlu0 %630, %v418
      %v632 = vpop.permute.xlu0 %631
      %634 = vset.pattern.permute.xlu0 9
      %635 = vperm.xlu0 %634, %v419
      %v636 = vpop.permute.xlu0 %635
      %v638 = vsel %vm628, %v632, 0.0
      %v639 = vsel %vm629, %v636, 0.0
      %v640 = vadd.f32 %v618, %v638
      %v641 = vadd.f32 %v619, %v639
      %v642 = vadd.s32 %v416, 26
      %v643 = vadd.s32 %v417, 26
      %644 = vset.pattern.permute.xlu0 10
      %645 = vperm.xlu0 %644, %v642
      %v646 = vpop.permute.xlu0 %645
      %647 = vset.pattern.permute.xlu0 10
      %648 = vperm.xlu0 %647, %v643
      %v649 = vpop.permute.xlu0 %648
      %vm650 = vcmp.eq.s32.totalorder %v421, %v646
      %vm651 = vcmp.eq.s32.totalorder %v421, %v649
      %652 = vset.pattern.permute.xlu0 10
      %653 = vperm.xlu0 %652, %v418
      %v654 = vpop.permute.xlu0 %653
      %656 = vset.pattern.permute.xlu0 10
      %657 = vperm.xlu0 %656, %v419
      %v658 = vpop.permute.xlu0 %657
      %v660 = vsel %vm650, %v654, 0.0
      %v661 = vsel %vm651, %v658, 0.0
      %v662 = vadd.f32 %v640, %v660
      %v663 = vadd.f32 %v641, %v661
      %v664 = vadd.s32 %v416, 28
      %v665 = vadd.s32 %v417, 28
      %666 = vset.pattern.permute.xlu0 11
      %667 = vperm.xlu0 %666, %v664
      %v668 = vpop.permute.xlu0 %667
      %669 = vset.pattern.permute.xlu0 11
      %670 = vperm.xlu0 %669, %v665
      %v671 = vpop.permute.xlu0 %670
      %vm672 = vcmp.eq.s32.totalorder %v421, %v668
      %vm673 = vcmp.eq.s32.totalorder %v421, %v671
      %674 = vset.pattern.permute.xlu0 11
      %675 = vperm.xlu0 %674, %v418
      %v676 = vpop.permute.xlu0 %675
      %678 = vset.pattern.permute.xlu0 11
      %679 = vperm.xlu0 %678, %v419
      %v680 = vpop.permute.xlu0 %679
      %v682 = vsel %vm672, %v676, 0.0
      %v683 = vsel %vm673, %v680, 0.0
      %v684 = vadd.f32 %v662, %v682
      %v685 = vadd.f32 %v663, %v683
      %v686 = vld [vmem:[%s2] sm:$0xff]
      %v687 = vld [vmem:[%s2 + $0x8] sm:$0xff]
      %v688 = vld [vmem:[%s2 + $0x10] sm:$0xff]
      %v689 = vld [vmem:[%s2 + $0x18] sm:$0xff]
      %v690 = vld [vmem:[%s2 + $0x20] sm:$0xff]
      %v691 = vld [vmem:[%s2 + $0x28] sm:$0xff]
      %v692 = vld [vmem:[%s2 + $0x30] sm:$0x3f]
      %v693 = vld [vmem:[%s2 + $0x38] sm:$0x3f]
      %v694 = vld [vmem:[%s3] sm:$0x3]
      %v696 = vlaneseq
      %v697 = vshrl.u32 %v696, 7
      %v698 = vsub.s32 0, %v697
      %v699 = vrot.slane %v694, %v698
      %v700 = vlaneseq
      %v701 = vshrl.u32 %v700, 7
      %v702 = vsub.s32 1, %v701
      %v703 = vrot.slane %v694, %v702
      %vm706 = vcmask 244736
      %v708 = vsel %vm706, %v684, 0
      %v711 = vsel %vm706, %v685, 0
      %vm713 = vcmask 1045504
      %v715 = vsel %vm713, %v692, 0
      %v718 = vsel %vm713, %v693, 0
      %720 = vmatprep.subr.mxu0 %v687
      %721 = vmatpush1.msra.mxu0 %v686
      %722 = vmatprep.subr.mxu0 %v689
      %723 = vmatpush1.msra.mxu0 %v688
      %724 = vmatprep.subr.mxu0 %v691
      %725 = vmatpush1.msra.mxu0 %v690
      %726 = vmatprep.subr.mxu0 %v718
      %727 = vmatpush1.msra.mxu0 %v715
      %728 = vmatprep.subr.mxu0 0.0
      %729 = vmatpush1.msra.mxu0 0.0
      %730 = vmatprep.subr.mxu0 0.0
      %731 = vmatpush1.msra.mxu0 0.0
      %732 = vmatprep.subr.mxu0 0.0
      %733 = vmatpush1.msra.mxu0 0.0
      %734 = vmatprep.subr.mxu0 0.0
      %735 = vmatpush1.msra.mxu0 0.0
      %736 = vmatprep.subr.mxu0 0.0
      %737 = vmatpush1.msra.mxu0 0.0
      %738 = vmatprep.subr.mxu0 0.0
      %739 = vmatpush1.msra.mxu0 0.0
      %740 = vmatprep.subr.mxu0 0.0
      %741 = vmatpush1.msra.mxu0 0.0
      %742 = vmatprep.subr.mxu0 0.0
      %743 = vmatpush1.msra.mxu0 0.0
      %744 = vmatprep.subr.mxu0 0.0
      %745 = vmatpush1.msra.mxu0 0.0
      %746 = vmatprep.subr.mxu0 0.0
      %747 = vmatpush1.msra.mxu0 0.0
      %748 = vmatprep.subr.mxu0 0.0
      %749 = vmatpush1.msra.mxu0 0.0
      %750 = vmatprep.subr.mxu0 0.0
      %751 = vmatpush1.msra.mxu0 0.0
      %752 = vmatprep.subr.mxu0 0.0
      %753 = vmatpush1.msra.mxu0 0.0
      %754 = vmatprep.subr.mxu0 0.0
      %755 = vmatpush1.msra.mxu0 0.0
      %756 = vmatprep.subr.mxu0 0.0
      %757 = vmatpush1.msra.mxu0 0.0
      %758 = vmatprep.subr.mxu0 0.0
      %759 = vmatpush1.msra.mxu0 0.0
      %760 = vmatprep.subr.mxu0 0.0
      %761 = vmatpush1.msra.mxu0 0.0
      %762 = vmatprep.subr.mxu0 0.0
      %763 = vmatpush1.msra.mxu0 0.0
      %764 = vmatprep.subr.mxu0 0.0
      %765 = vmatpush1.msra.mxu0 0.0
      %766 = vmatprep.subr.mxu0 0.0
      %767 = vmatpush1.msra.mxu0 0.0
      %768 = vmatprep.subr.mxu0 0.0
      %769 = vmatpush1.msra.mxu0 0.0
      %770 = vmatprep.subr.mxu0 0.0
      %771 = vmatpush1.msra.mxu0 0.0
      %772 = vmatprep.subr.mxu0 0.0
      %773 = vmatpush1.msra.mxu0 0.0
      %774 = vmatprep.subr.mxu0 0.0
      %775 = vmatpush1.msra.mxu0 0.0
      %776 = vmatprep.subr.mxu0 0.0
      %777 = vmatpush1.msra.mxu0 0.0
      %778 = vmatprep.subr.mxu0 0.0
      %779 = vmatpush1.msra.mxu0 0.0
      %780 = vmatprep.subr.mxu0 0.0
      %781 = vmatpush1.msra.mxu0 0.0
      %782 = vmatprep.subr.mxu0 0.0
      %783 = vmatpush1.msra.mxu0 0.0
      %784 = vmatprep.mubr.f32.mxu0 0.0
      %785 = vmatmul.mubr.f32.gmra.mrb[0].mxu0 %v708
      %v786 = vpop.f32.mrb[0].mxu0
      %v787 = vadd.f32 %v699, %v786
      %v788 = vpop.f32.mrb[0].mxu0
      %v789 = vadd.f32 %v703, %v788
      %790 = vmatprep.mubr.f32.mxu0 0.0
      %791 = vmatmul.mubr.f32.gmra.mrb[0].mxu0 %v711
      %v792 = vpop.f32.mrb[0].mxu0
      %v793 = vadd.f32 %v699, %v792
      %v794 = vpop.f32.mrb[0].mxu0
      %v795 = vadd.f32 %v703, %v794
      %796 = vdwg.mxu0
      %v797 = vmul.f32 %v789, %v789
      %v798 = vmul.f32 %v795, %v795
      %801 = vrot.lane.b32.xlu0 %v797, 64
      %v802 = vpop.permute.xlu0 %801
      %803 = vrot.lane.b32.xlu0 %v798, 64
      %v804 = vpop.permute.xlu0 %803
      %vm807 = vcmask 130048
      %v808 = vsel %vm807, %v802, 0.0
      %809 = vadd.xlane.f32.xlu0 %v808
      %v810 = vpop.xlane.xlu0 %809
      %v811 = vsel %vm807, %v804, 0.0
      %812 = vadd.xlane.f32.xlu0 %v811
      %v813 = vpop.xlane.xlu0 %812
      %v814 = vmul.f32 %v787, %v787
      %v815 = vmul.f32 %v793, %v793
      %vm816 = vcmask 523264
      %v817 = vsel %vm816, %v797, 0.0
      %v818 = vadd.f32 %v814, %v817
      %819 = vadd.xlane.f32.xlu0 %v818
      %v820 = vpop.xlane.xlu0 %819
      %v821 = vsel %vm816, %v798, 0.0
      %v822 = vadd.f32 %v815, %v821
      %823 = vadd.xlane.f32.xlu0 %v822
      %v824 = vpop.xlane.xlu0 %823
      %v825 = vsub.f32 %v810, %v820
      %v826 = vsub.f32 %v813, %v824
      %v827 = vmul.f32 %v825, 0.5
      %v828 = vmul.f32 %v826, 0.5
      %v829 = vmax.f32 %v789, 0.0
      %v830 = vmax.f32 %v795, 0.0
      %v831 = vld [vmem:[%s4] sm:$0xff]
      %v832 = vld [vmem:[%s4 + $0x8] sm:$0xff]
      %v833 = vld [vmem:[%s4 + $0x10] sm:$0xff]
      %v834 = vld [vmem:[%s4 + $0x18] sm:$0xff]
      %v835 = vld [vmem:[%s5] sm:$0x1]
      %v837 = vlaneseq
      %v838 = vshrl.u32 %v837, 7
      %v839 = vsub.s32 0, %v838
      %v840 = vrot.slane %v835, %v839
      %844 = vrot.lane.b32.xlu0 %v829, 48
      %v845 = vpop.permute.xlu0 %844
      %846 = vrot.lane.b32.xlu0 %v830, 48
      %v847 = vpop.permute.xlu0 %846
      %vm848 = vcmask 261120
      %v849 = vsel %vm848, %v845, 0
      %v851 = vsel %vm848, %v847, 0
      %853 = vmatprep.subr.mxu0 0.0
      %854 = vmatpush1.msra.mxu0 %v831
      %855 = vmatprep.subr.mxu0 0.0
      %856 = vmatpush1.msra.mxu0 %v832
      %857 = vmatprep.subr.mxu0 0.0
      %858 = vmatpush1.msra.mxu0 %v833
      %859 = vmatprep.subr.mxu0 0.0
      %860 = vmatpush1.msra.mxu0 %v834
      %861 = vmatprep.subr.mxu0 0.0
      %862 = vmatpush1.msra.mxu0 0.0
      %863 = vmatprep.subr.mxu0 0.0
      %864 = vmatpush1.msra.mxu0 0.0
      %865 = vmatprep.subr.mxu0 0.0
      %866 = vmatpush1.msra.mxu0 0.0
      %867 = vmatprep.subr.mxu0 0.0
      %868 = vmatpush1.msra.mxu0 0.0
      %869 = vmatprep.subr.mxu0 0.0
      %870 = vmatpush1.msra.mxu0 0.0
      %871 = vmatprep.subr.mxu0 0.0
      %872 = vmatpush1.msra.mxu0 0.0
      %873 = vmatprep.subr.mxu0 0.0
      %874 = vmatpush1.msra.mxu0 0.0
      %875 = vmatprep.subr.mxu0 0.0
      %876 = vmatpush1.msra.mxu0 0.0
      %877 = vmatprep.subr.mxu0 0.0
      %878 = vmatpush1.msra.mxu0 0.0
      %879 = vmatprep.subr.mxu0 0.0
      %880 = vmatpush1.msra.mxu0 0.0
      %881 = vmatprep.subr.mxu0 0.0
      %882 = vmatpush1.msra.mxu0 0.0
      %883 = vmatprep.subr.mxu0 0.0
      %884 = vmatpush1.msra.mxu0 0.0
      %885 = vmatprep.subr.mxu0 0.0
      %886 = vmatpush1.msra.mxu0 0.0
      %887 = vmatprep.subr.mxu0 0.0
      %888 = vmatpush1.msra.mxu0 0.0
      %889 = vmatprep.subr.mxu0 0.0
      %890 = vmatpush1.msra.mxu0 0.0
      %891 = vmatprep.subr.mxu0 0.0
      %892 = vmatpush1.msra.mxu0 0.0
      %893 = vmatprep.subr.mxu0 0.0
      %894 = vmatpush1.msra.mxu0 0.0
      %895 = vmatprep.subr.mxu0 0.0
      %896 = vmatpush1.msra.mxu0 0.0
      %897 = vmatprep.subr.mxu0 0.0
      %898 = vmatpush1.msra.mxu0 0.0
      %899 = vmatprep.subr.mxu0 0.0
      %900 = vmatpush1.msra.mxu0 0.0
      %901 = vmatprep.subr.mxu0 0.0
      %902 = vmatpush1.msra.mxu0 0.0
      %903 = vmatprep.subr.mxu0 0.0
      %904 = vmatpush1.msra.mxu0 0.0
      %905 = vmatprep.subr.mxu0 0.0
      %906 = vmatpush1.msra.mxu0 0.0
      %907 = vmatprep.subr.mxu0 0.0
      %908 = vmatpush1.msra.mxu0 0.0
      %909 = vmatprep.subr.mxu0 0.0
      %910 = vmatpush1.msra.mxu0 0.0
      %911 = vmatprep.subr.mxu0 0.0
      %912 = vmatpush1.msra.mxu0 0.0
      %913 = vmatprep.subr.mxu0 0.0
      %914 = vmatpush1.msra.mxu0 0.0
      %915 = vmatprep.subr.mxu0 0.0
      %916 = vmatpush1.msra.mxu0 0.0
      %917 = vmatprep.mubr.f32.mxu0 0.0
      %918 = vmatmul.mubr.f32.gmra.mrb[0].mxu0 %v849
      %v919 = vpop.f32.mrb[0].mxu0
      %v920 = vadd.f32 %v840, %v919
      %v921 = vpop.f32.mrb[0].mxu0
      %922 = vmatprep.mubr.f32.mxu0 0.0
      %923 = vmatmul.mubr.f32.gmra.mrb[0].mxu0 %v851
      %v924 = vpop.f32.mrb[0].mxu0
      %v925 = vadd.f32 %v840, %v924
      %v926 = vpop.f32.mrb[0].mxu0
      %927 = vdwg.mxu0
      %v928 = vmax.f32 %v920, 0.0
      %v929 = vmax.f32 %v925, 0.0
      %v930 = vld [vmem:[%s6] sm:$0xff]
      %v931 = vld [vmem:[%s6 + $0x8] sm:$0xff]
      %v932 = vld [vmem:[%s6 + $0x10] sm:$0xff]
      %v933 = vld [vmem:[%s6 + $0x18] sm:$0xff]
      %v934 = vld [vmem:[%s6 + $0x20] sm:$0xff]
      %v935 = vld [vmem:[%s6 + $0x28] sm:$0xff]
      %v936 = vld [vmem:[%s6 + $0x30] sm:$0xff]
      %v937 = vld [vmem:[%s6 + $0x38] sm:$0xff]
      %v938 = vld [vmem:[%s7] sm:$0x1]
      %v940 = vlaneseq
      %v941 = vshrl.u32 %v940, 7
      %v942 = vsub.s32 0, %v941
      %v943 = vrot.slane %v938, %v942
      %v946 = vsel %vm816, %v928, 0
      %v949 = vsel %vm816, %v929, 0
      %951 = vmatprep.subr.mxu0 0.0
      %952 = vmatpush1.msra.mxu0 %v930
      %953 = vmatprep.subr.mxu0 0.0
      %954 = vmatpush1.msra.mxu0 %v931
      %955 = vmatprep.subr.mxu0 0.0
      %956 = vmatpush1.msra.mxu0 %v932
      %957 = vmatprep.subr.mxu0 0.0
      %958 = vmatpush1.msra.mxu0 %v933
      %959 = vmatprep.subr.mxu0 0.0
      %960 = vmatpush1.msra.mxu0 %v934
      %961 = vmatprep.subr.mxu0 0.0
      %962 = vmatpush1.msra.mxu0 %v935
      %963 = vmatprep.subr.mxu0 0.0
      %964 = vmatpush1.msra.mxu0 %v936
      %965 = vmatprep.subr.mxu0 0.0
      %966 = vmatpush1.msra.mxu0 %v937
      %967 = vmatprep.subr.mxu0 0.0
      %968 = vmatpush1.msra.mxu0 0.0
      %969 = vmatprep.subr.mxu0 0.0
      %970 = vmatpush1.msra.mxu0 0.0
      %971 = vmatprep.subr.mxu0 0.0
      %972 = vmatpush1.msra.mxu0 0.0
      %973 = vmatprep.subr.mxu0 0.0
      %974 = vmatpush1.msra.mxu0 0.0
      %975 = vmatprep.subr.mxu0 0.0
      %976 = vmatpush1.msra.mxu0 0.0
      %977 = vmatprep.subr.mxu0 0.0
      %978 = vmatpush1.msra.mxu0 0.0
      %979 = vmatprep.subr.mxu0 0.0
      %980 = vmatpush1.msra.mxu0 0.0
      %981 = vmatprep.subr.mxu0 0.0
      %982 = vmatpush1.msra.mxu0 0.0
      %983 = vmatprep.subr.mxu0 0.0
      %984 = vmatpush1.msra.mxu0 0.0
      %985 = vmatprep.subr.mxu0 0.0
      %986 = vmatpush1.msra.mxu0 0.0
      %987 = vmatprep.subr.mxu0 0.0
      %988 = vmatpush1.msra.mxu0 0.0
      %989 = vmatprep.subr.mxu0 0.0
      %990 = vmatpush1.msra.mxu0 0.0
      %991 = vmatprep.subr.mxu0 0.0
      %992 = vmatpush1.msra.mxu0 0.0
      %993 = vmatprep.subr.mxu0 0.0
      %994 = vmatpush1.msra.mxu0 0.0
      %995 = vmatprep.subr.mxu0 0.0
      %996 = vmatpush1.msra.mxu0 0.0
      %997 = vmatprep.subr.mxu0 0.0
      %998 = vmatpush1.msra.mxu0 0.0
      %999 = vmatprep.subr.mxu0 0.0
      %1000 = vmatpush1.msra.mxu0 0.0
      %1001 = vmatprep.subr.mxu0 0.0
      %1002 = vmatpush1.msra.mxu0 0.0
      %1003 = vmatprep.subr.mxu0 0.0
      %1004 = vmatpush1.msra.mxu0 0.0
      %1005 = vmatprep.subr.mxu0 0.0
      %1006 = vmatpush1.msra.mxu0 0.0
      %1007 = vmatprep.subr.mxu0 0.0
      %1008 = vmatpush1.msra.mxu0 0.0
      %1009 = vmatprep.subr.mxu0 0.0
      %1010 = vmatpush1.msra.mxu0 0.0
      %1011 = vmatprep.subr.mxu0 0.0
      %1012 = vmatpush1.msra.mxu0 0.0
      %1013 = vmatprep.subr.mxu0 0.0
      %1014 = vmatpush1.msra.mxu0 0.0
      %1015 = vmatprep.mubr.f32.mxu0 0.0
      %1016 = vmatmul.mubr.f32.gmra.mrb[0].mxu0 %v946
      %v1017 = vpop.f32.mrb[0].mxu0
      %v1018 = vadd.f32 %v943, %v1017
      %v1019 = vpop.f32.mrb[0].mxu0
      %1020 = vmatprep.mubr.f32.mxu0 0.0
      %1021 = vmatmul.mubr.f32.gmra.mrb[0].mxu0 %v949
      %v1022 = vpop.f32.mrb[0].mxu0
      %v1023 = vadd.f32 %v943, %v1022
      %v1024 = vpop.f32.mrb[0].mxu0
      %1025 = vdwg.mxu0
      %v1026 = vmax.f32 %v1018, 0.0
      %v1027 = vmax.f32 %v1023, 0.0
      %v1028 = vld [vmem:[%s8] sm:$0x1]
      %v1030 = vlaneseq
      %v1031 = vshrl.u32 %v1030, 7
      %v1032 = vsub.s32 0, %v1031
      %v1033 = vrot.slane %v1028, %v1032
      %v1035 = vmul.f32 %v1026, %v1033
      %v1036 = vmul.f32 %v1027, %v1033
      %v1037 = vsel %vm848, %v1035, 0.0
      %1038 = vadd.xlane.f32.xlu0 %v1037
      %v1039 = vpop.xlane.xlu0 %1038
      %v1040 = vsel %vm848, %v1036, 0.0
      %1041 = vadd.xlane.f32.xlu0 %v1040
      %v1042 = vpop.xlane.xlu0 %1041
      %v1043 = vld [vmem:[#allocation2] sm:$0x1]
      %v1045 = vlaneseq
      %v1046 = vshrl.u32 %v1045, 7
      %v1047 = vsub.s32 0, %v1046
      %v1048 = vrot.slane %v1043, %v1047
      %v1050 = vadd.f32 %v1039, %v1048
      %v1051 = vadd.f32 %v1042, %v1048
      %v1052 = vmax.f32 %v1050, 0.0
      %v1053 = vmax.f32 %v1051, 0.0
      %v1054 = vadd.f32 %v789, %v827
      %v1055 = vadd.f32 %v795, %v828
      %1058 = vrot.lane.b32.xlu0 %v1052, 112
      %v1059 = vpop.permute.xlu0 %1058
      %1060 = vrot.lane.b32.xlu0 %v1053, 112
      %v1061 = vpop.permute.xlu0 %1060
      %v1064 = vadd.f32 %v1054, %v1059
      %v1065 = vadd.f32 %v1055, %v1061
      %v1066 = vld [vmem:[#allocation3] sm:$0x1]
      %v1068 = vlaneseq
      %v1069 = vshrl.u32 %v1068, 7
      %v1070 = vsub.s32 0, %v1069
      %v1071 = vrot.slane %v1066, %v1070
      %1072 = vrot.lane.b32.xlu0 %v1071, 112
      %v1073 = vpop.permute.xlu0 %1072
      %v1075 = vadd.f32 %v1064, %v1073
      %v1076 = vadd.f32 %v1065, %v1073
      %1079 = vrot.lane.b32.xlu0 %v1075, 16
      %v1080 = vpop.permute.xlu0 %1079
      %1081 = vrot.lane.b32.xlu0 %v1076, 16
      %v1082 = vpop.permute.xlu0 %1081
      %vm1085 = vcmask 7168
      %1086 = vst.msk [vmem:[%s414] sm:$0xff] %vm1085, %v1080
      %1087 = vst.msk [vmem:[%s414 + $0x8] sm:$0xff] %vm1085, %v1082
      %s1088 = smul.u32 2, %s26
      %p1089 = scmp.lt.s32.totalorder %s1088, 5
      %s1090 = scalar_select %p1089, %s1088, 5
      %s1091 = smul.addr %s1090, 8
      %s1092 = scalar_lea.vmem %s11, %s1091
      // Predicated region
      $region65: #{tpu_custom_call.1} parent=63 // pred_check
        %p1093 = pneg %p285
      $region66: #{tpu_custom_call.1} parent=63 // pred_check_branch
        %1095 = sbr.rel (%p1093) target = $region68
      $region67: #{tpu_custom_call.1} parent=63 // pred_region
        %s1096 = smul.u32 2, %s26
      $region68: #{tpu_custom_call.1} parent=63 // pred_fallthru
        _
    $region64: #{tpu_custom_call.1} parent=5 // pred_fallthru
      _
    %p1097 = scmp.le.s32.totalorder 2, %s21
    // Predicated region
    $region69: #{tpu_custom_call.1} parent=5 // pred_check
      %p1098 = pneg %p1097
    $region70: #{tpu_custom_call.1} parent=5 // pred_check_branch
      %1100 = sbr.rel (%p1098) target = $region72
    $region71: #{tpu_custom_call.1} parent=5 // pred_region
      %s1101 = ssub.s32 %s21, 2
      // Predicated region
      $region73: #{tpu_custom_call.1} parent=71 // pred_check
        %p1102 = pneg %p291
      $region74: #{tpu_custom_call.1} parent=71 // pred_check_branch
        %1104 = sbr.rel (%p1102) target = $region76
      $region75: #{tpu_custom_call.1} parent=71 // pred_region
        %s1105 = smul.u32 2, %s27
        %p1106 = scmp.lt.s32.totalorder %s1105, 5
        %s1107 = scalar_select %p1106, %s1105, 5
        %s1108 = smul.addr %s1107, 8
        %s1109 = scalar_lea.vmem %s11, %s1108
      $region76: #{tpu_custom_call.1} parent=71 // pred_fallthru
        _
    $region72: #{tpu_custom_call.1} parent=5 // pred_fallthru
      _
  $region6: #{tpu_custom_call.1} parent=0 // loop_footer
    %s25 = sadd.s32 1, %s21
  $region7: #{tpu_custom_call.1} parent=0 // loop_footer_branch
    %20 = sbr.rel target = $region3
  $region8: #{tpu_custom_call.1} parent=0 // loop_exit
    _

</llo_original>
